<compile_context>
chip_gen: v7x
topology: tpu7x:2x2x1
jax: 0.10.0
libtpu: 0.0.40
codegen_flags: <defaults>
</compile_context>

<pallas_src>
import functools
import math

import jax
import jax.numpy as jnp
from jax import lax
from jax.experimental import pallas as pl
from jax.experimental.pallas import tpu as pltpu

MIN_NORM = 1e-15
MIN_NORM_SQ = MIN_NORM * MIN_NORM
BALL_EPS = 4e-3      # AttH Poincare-ball projection eps for float32
ATANH_EPS = 1e-5


def _round_up(x, m):
    return ((x + m - 1) // m) * m


def _softplus(x):
    return jnp.maximum(x, 0.0) + jnp.log1p(jnp.exp(-jnp.abs(x)))


def _log_sigmoid(x):
    return jnp.minimum(x, 0.0) - jnp.log1p(jnp.exp(-jnp.abs(x)))


def _artanh(x):
    # One log instead of two log1p: fewer EUP ops on the hot (K, bm) path.
    x = jnp.clip(x, -1.0 + ATANH_EPS, 1.0 - ATANH_EPS)
    return 0.5 * jnp.log((1.0 + x) / (1.0 - x))


def _atth_score_parts(head, rel, scl, tails, *, scale, recip):
    """AttH score + per-row weighted negative-sampling loss parts.

    Batch-in-lanes layout (n = batch lanes):
      head : (2, r2, n)     [h_even, h_odd]
      rel  : (8, r2, n)     [rot1, rot2, rf1, rf2, cx1, cx2, rl1, rl2]
      scl  : (3+K, n)       [c_raw, bh, subsampling_weight, bt_0..bt_{K-1}]
      tails: (2, K, r2, n)  [t_even, t_odd]
    Pure jnp/lax so it runs both inside the Pallas kernel and as the
    plain-JAX reference (with `recip` = exact reciprocal).
    """
    h1, h2 = head[0], head[1]                           # (r2, n)
    rot1, rot2 = rel[0], rel[1]
    rf1, rf2 = rel[2], rel[3]
    cx1, cx2 = rel[4], rel[5]
    rl1, rl2 = rel[6], rel[7]
    c_raw = scl[0:1]                                    # (1, n)
    bh = scl[1:2]
    sw = scl[2:3]
    bt = scl[3:]                                        # (K, n)
    t1, t2 = tails[0], tails[1]                         # (K, r2, n)

    # --- Givens rotation of the head (rsqrt, no sqrt+divide) ---
    inv_rn = lax.rsqrt(jnp.maximum(rot1 * rot1 + rot2 * rot2, MIN_NORM_SQ))
    g1, g2 = rot1 * inv_rn, rot2 * inv_rn
    rotq1 = g1 * h1 - g2 * h2
    rotq2 = g1 * h2 + g2 * h1
    # --- Givens reflection of the head ---
    inv_fn = lax.rsqrt(jnp.maximum(rf1 * rf1 + rf2 * rf2, MIN_NORM_SQ))
    f1, f2 = rf1 * inv_fn, rf2 * inv_fn
    refq1 = f1 * h1 + f2 * h2
    refq2 = f2 * h1 - f1 * h2

    # --- attention over {reflection, rotation} candidates ---
    a_ref = jnp.sum(cx1 * refq1 + cx2 * refq2, axis=0, keepdims=True) * scale  # (1, n)
    a_rot = jnp.sum(cx1 * rotq1 + cx2 * rotq2, axis=0, keepdims=True) * scale
    m = jnp.maximum(a_ref, a_rot)
    e_ref = jnp.exp(a_ref - m)
    e_rot = jnp.exp(a_rot - m)
    inv = recip(e_ref + e_rot)                          # bounded in [1, 2] -> approx OK
    alpha_ref, alpha_rot = e_ref * inv, e_rot * inv
    q1 = alpha_ref * refq1 + alpha_rot * rotq1
    q2 = alpha_ref * refq2 + alpha_rot * rotq2

    c = _softplus(c_raw)                                # (1, n) per-relation curvature
    inv_sqrt_c = lax.rsqrt(jnp.maximum(c, MIN_NORM))
    sqrt_c = c * inv_sqrt_c

    def expmap0(u1, u2):
        usq = jnp.maximum(jnp.sum(u1 * u1 + u2 * u2, axis=0, keepdims=True), MIN_NORM_SQ)
        inv_un = lax.rsqrt(usq)
        un = usq * inv_un                               # == sqrt(usq)
        th = jnp.tanh(sqrt_c * un)
        fac = th * inv_un * inv_sqrt_c
        mapped_sq = (th * inv_sqrt_c) ** 2              # ||expmap0(u)||^2 (no re-reduce)
        return fac * u1, fac * u2, mapped_sq

    lhs1, lhs2, x2 = expmap0(q1, q2)
    rr1, rr2, y2 = expmap0(rl1, rl2)

    # --- mobius_add(lhs, rel, c) ---
    xy = jnp.sum(lhs1 * rr1 + lhs2 * rr2, axis=0, keepdims=True)
    cfx = 1.0 + 2.0 * c * xy + c * y2
    cfy = 1.0 - c * x2
    inv_den = 1.0 / jnp.maximum(1.0 + 2.0 * c * xy + c * c * x2 * y2, MIN_NORM)
    res1 = (cfx * lhs1 + cfy * rr1) * inv_den
    res2 = (cfx * lhs2 + cfy * rr2) * inv_den

    # --- project back onto the ball ---
    rsq = jnp.maximum(jnp.sum(res1 * res1 + res2 * res2, axis=0, keepdims=True), MIN_NORM_SQ)
    inv_rnorm = lax.rsqrt(rsq)
    rnorm = rsq * inv_rnorm
    maxnorm = (1.0 - BALL_EPS) * inv_sqrt_c
    clip = jnp.where(rnorm > maxnorm, maxnorm * inv_rnorm, 1.0)
    res1, res2 = res1 * clip, res2 * clip
    xsq = jnp.minimum(rnorm, maxnorm) ** 2              # ||res||^2 after clip (no re-reduce)

    # --- hyperbolic distance (per-relation curvature) to every candidate tail ---
    tsq = jnp.maximum(jnp.sum(t1 * t1 + t2 * t2, axis=1), MIN_NORM_SQ)        # (K, n)
    inv_vnorm = lax.rsqrt(tsq)
    vnorm = tsq * inv_vnorm
    xv = jnp.sum(res1[None] * t1 + res2[None] * t2, axis=1) * inv_vnorm       # (K, n)
    gamma = jnp.tanh(sqrt_c * vnorm) * inv_sqrt_c                             # (K, n)
    c1 = 1.0 - 2.0 * c * gamma * xv + c * gamma * gamma
    c2 = 1.0 - c * xsq
    num = jnp.sqrt(jnp.maximum(
        c1 * c1 * xsq + c2 * c2 * gamma * gamma - 2.0 * c1 * c2 * gamma * xv, 0.0))
    den2 = jnp.maximum(1.0 - 2.0 * c * gamma * xv + c * c * gamma * gamma * xsq, MIN_NORM)
    dist = 2.0 * _artanh(sqrt_c * num / den2) * inv_sqrt_c                    # (K, n)

    score = bh + bt - dist * dist                                             # (K, n)

    # --- negative sampling loss parts: one fused log-sigmoid pass ---
    K = score.shape[0]
    row = lax.broadcasted_iota(jnp.int32, score.shape, 0)
    ls = _log_sigmoid(jnp.where(row == 0, score, -score))                     # (K, n)
    p_ls = ls[0:1]                                                            # (1, n)
    n_ls = (jnp.sum(ls, axis=0, keepdims=True) - p_ls) * (1.0 / max(K - 1, 1))
    return score, sw * p_ls, sw * n_ls


def _kd_atth_kernel(head_ref, rel_ref, scl_ref, tails_ref, score_ref, parts_ref, *, scale):
    score, p_part, n_part = _atth_score_parts(
        head_ref[...], rel_ref[...], scl_ref[...], tails_ref[...],
        scale=scale,
        recip=lambda x: pl.reciprocal(x, approx=True))   # EUP vrcp: frees VPU bundles
    score_ref[...] = score                               # (K, bm) lane-dense store
    parts_ref[...] = jnp.concatenate([p_part, n_part], axis=0)   # (2, bm)


def _pack_inputs(params, data, subsampling_weight, b_pad):
    """EmbeddingManager: gathers + pair-split + batch-in-lanes repack (glue).

    Padding is applied to the *index* arrays, so the big gathered tensors are
    written once (gather) and repacked once (reshape/transpose) -- no extra
    full-tensor pad pass.  Padded rows read real embeddings (row 0) and carry
    subsampling_weight == 0, so they contribute exactly 0 loss.
    """
    h_idx, r_idx, t_idx = data
    B, K = t_idx.shape
    d = params["entity"].shape[1]
    assert d % 2 == 0, "AttH rank must be even"
    r2 = d // 2
    scale = 1.0 / math.sqrt(d)
    pad = b_pad - B

    hp = jnp.pad(h_idx, (0, pad))
    rp = jnp.pad(r_idx, (0, pad))
    tp = jnp.pad(t_idx, ((0, pad), (0, 0)))
    swp = jnp.pad(subsampling_weight.astype(jnp.float32).reshape(B), (0, pad))

    ent = params["entity"].astype(jnp.float32)
    # head: (b, d) -> (2, r2, b)   [even, odd] pair split folded into the transpose
    head_pack = ent[hp].reshape(b_pad, r2, 2).transpose(2, 1, 0)
    # tails: (b, K, d) -> (2, K, r2, b) -- dominant stream: 1 gather + 1 repack pass
    tails_pack = ent[tp].reshape(b_pad, K, r2, 2).transpose(3, 1, 2, 0)

    rel_diag = params["rel_diag"].astype(jnp.float32)[rp]          # (b, 2d)
    ctx = params["context_vec"].astype(jnp.float32)[rp]            # (b, d)
    rel_t = params["rel"].astype(jnp.float32)[rp][:, :d]           # translation chunk
    comps = jnp.stack([rel_diag[:, :d], rel_diag[:, d:], ctx, rel_t], axis=0)   # (4, b, d)
    # -> (8, r2, b) ordered [rot1, rot2, rf1, rf2, cx1, cx2, rl1, rl2]
    rel_pack = comps.reshape(4, b_pad, r2, 2).transpose(0, 3, 2, 1).reshape(8, r2, b_pad)

    c_g = params["c"].astype(jnp.float32)[rp][:, 0]                # (b,)
    bh_g = params["bh"].astype(jnp.float32)[hp][:, 0]              # (b,)
    bt_g = params["bt"].astype(jnp.float32)[tp][..., 0]            # (b, K)
    scl = jnp.concatenate([c_g[None], bh_g[None], swp[None], bt_g.T], axis=0)   # (3+K, b)

    return head_pack, rel_pack, scl, tails_pack, scale, B, K, r2


def kd_model_atth_reverse_forward(params, data, subsampling_weight, *,
                                  block_b=None, vmem_budget_bytes=None):
    """Pallas implementation of KDModelAttH_Reverse.forward."""
    h_idx, r_idx, t_idx = data
    B, K = t_idx.shape
    d = params["entity"].shape[1]
    assert d % 2 == 0, "AttH rank must be even"
    r2 = d // 2

    # --- generation-aware VMEM sizing (padded tile sizes + live temporaries) ---
    def r8(v):
        return _round_up(v, 8)

    per_col_in = (10 * r8(r2) + r8(3 + K) + 2 * K * r8(r2)) * 4       # f32, per lane
    per_col_out = (r8(K) + 8) * 4
    per_col_tmp = (6 * K * r8(r2) + 24 * r8(r2) + 12 * r8(K)) * 4     # live (K,r2,bm) temps etc.
    per_col = 2 * (per_col_in + per_col_out) + per_col_tmp            # 2x = double buffering

    try:
        vmem_cap = int(pltpu.get_tpu_info().vmem_capacity_bytes)      # 64 MiB v7x, 128 MiB v5e/v6e
    except Exception:  # pragma: no cover - conservative fallback
        vmem_cap = 64 * 1024 * 1024
    if vmem_budget_bytes is None:
        vmem_budget_bytes = min(32 * 1024 * 1024, max(8 * 1024 * 1024, vmem_cap // 5))

    if block_b is None:
        bm = max(128, (vmem_budget_bytes // per_col) // 128 * 128)
        bm = min(bm, 1024)
    else:
        bm = max(128, _round_up(block_b, 128))
    b128 = _round_up(B, 128)
    bm = min(bm, b128)
    # keep >= 4 grid steps when the batch allows it (pipeline overlap; v7x 2-TC sharding)
    min_steps = 4
    if b128 >= min_steps * 128:
        bm = min(bm, max(128, (b128 // min_steps) // 128 * 128))
    B_pad = _round_up(B, bm)

    vmem_limit = int(min(vmem_cap // 2, max(16 * 1024 * 1024, per_col * bm + 8 * 1024 * 1024)))

    head_pack, rel_pack, scl, tails_pack, scale, _, _, _ = _pack_inputs(
        params, data, subsampling_weight, B_pad)

    grid = (B_pad // bm,)
    in_specs = [
        pl.BlockSpec((2, r2, bm), lambda i: (0, 0, i)),
        pl.BlockSpec((8, r2, bm), lambda i: (0, 0, i)),
        pl.BlockSpec((3 + K, bm), lambda i: (0, i)),
        pl.BlockSpec((2, K, r2, bm), lambda i: (0, 0, 0, i)),
    ]
    out_specs = [
        pl.BlockSpec((K, bm), lambda i: (0, i)),
        pl.BlockSpec((2, bm), lambda i: (0, i)),
    ]
    out_shape = [
        jax.ShapeDtypeStruct((K, B_pad), jnp.float32),
        jax.ShapeDtypeStruct((2, B_pad), jnp.float32),
    ]

    score_pad, parts = pl.pallas_call(
        functools.partial(_kd_atth_kernel, scale=scale),
        grid_spec=pltpu.PrefetchScalarGridSpec(
            num_scalar_prefetch=0, grid=grid,
            in_specs=in_specs, out_specs=out_specs),
        out_shape=out_shape,
        compiler_params=pltpu.CompilerParams(
            dimension_semantics=("parallel",),     # independent batch blocks
            vmem_limit_bytes=vmem_limit),
    )(head_pack, rel_pack, scl, tails_pack)

    # final scalar arithmetic (glue); padded columns contribute exactly 0 (sw == 0)
    score = score_pad[:, :B].T                                      # (B, K)
    w_sum = jnp.sum(subsampling_weight.astype(jnp.float32))
    pos_loss = -jnp.sum(parts[0]) / w_sum
    neg_loss = -jnp.sum(parts[1]) / w_sum
    loss = (pos_loss + neg_loss) / 2.0
    loss_record = {
        "positive_sample_loss": pos_loss,
        "negative_sample_loss": neg_loss,
        "loss": loss,
    }
    # TODO(synk): for very large negative-sample counts the tail gather itself could
    # move in-kernel (scalar-prefetched t_idx + manual DMA from an HBM entity table).
    return loss, loss_record, score


def reference_forward(params, data, subsampling_weight):
    """Pure-JAX reference mirroring the same math (exact reciprocals)."""
    B = data[2].shape[0]
    head, rel, scl, tails, scale, _, _, _ = _pack_inputs(
        params, data, subsampling_weight, B)
    score_t, p_part, n_part = _atth_score_parts(
        head, rel, scl, tails, scale=scale, recip=lambda x: 1.0 / x)
    sw = subsampling_weight.astype(jnp.float32)
    w_sum = jnp.sum(sw)
    pos_loss = -jnp.sum(p_part) / w_sum
    neg_loss = -jnp.sum(n_part) / w_sum
    loss = (pos_loss + neg_loss) / 2.0
    return loss, score_t.T


if __name__ == "__main__":
    key = jax.random.PRNGKey(0)
    n_ent, n_rel_base, rank = 64, 8, 32
    n_rel = 2 * n_rel_base            # forward + reverse relations ("_Reverse")
    B, K = 20, 8                      # ragged batch (exercises padding); K = 1 pos + 7 neg

    ks = jax.random.split(key, 10)
    init = 1e-1
    params = {
        "entity": init * jax.random.normal(ks[0], (n_ent, rank), jnp.float32),
        "rel": init * jax.random.normal(ks[1], (n_rel, 2 * rank), jnp.float32),
        "rel_diag": 2.0 * jax.random.uniform(ks[2], (n_rel, 2 * rank), jnp.float32) - 1.0,
        "context_vec": init * jax.random.normal(ks[3], (n_rel, rank), jnp.float32),
        "c": jnp.ones((n_rel, 1), jnp.float32),
        "bh": init * jax.random.normal(ks[4], (n_ent, 1), jnp.float32),
        "bt": init * jax.random.normal(ks[5], (n_ent, 1), jnp.float32),
    }

    h_idx = jax.random.randint(ks[6], (B,), 0, n_ent)
    r_idx = jax.random.randint(ks[7], (B,), 0, n_rel)
    t_idx = jax.random.randint(ks[8], (B, K), 0, n_ent)
    subsampling_weight = jax.random.uniform(ks[9], (B,), jnp.float32, 0.5, 1.5)
    data = (h_idx, r_idx, t_idx)

    # TODO(synk): EntityPruner / RelationPruner / KDLoss are not invoked in the
    # reference forward(), so they are intentionally not part of the kernel.
    fwd = jax.jit(kd_model_atth_reverse_forward)
    loss, record, score = fwd(params, data, subsampling_weight)
    jax.block_until_ready((loss, record, score))

    ref_loss, ref_score = reference_forward(params, data, subsampling_weight)
    assert score.shape == (B, K), "score shape mismatch"
    assert jnp.allclose(score, ref_score, atol=2e-3, rtol=2e-3), "score mismatch"
    assert jnp.allclose(loss, ref_loss, atol=1e-3, rtol=1e-3), "loss mismatch"
    assert bool(jnp.isfinite(loss)), "non-finite loss"
    print("KERNEL_OK")
</pallas_src>

<mosaic_0001>
module attributes {stable_mosaic.version = 11 : i64} {
  func.func @_kd_atth_kernel(%arg0: i32, %arg1: memref<2x16x128xf32, #tpu.memory_space<vmem>>, %arg2: memref<8x16x128xf32, #tpu.memory_space<vmem>>, %arg3: memref<11x128xf32, #tpu.memory_space<vmem>>, %arg4: memref<2x8x16x128xf32, #tpu.memory_space<vmem>>, %arg5: memref<8x128xf32, #tpu.memory_space<vmem>>, %arg6: memref<2x128xf32, #tpu.memory_space<vmem>>) attributes {dimension_semantics = [#tpu.dimension_semantics<parallel>], iteration_bounds = array<i64: 1>, scalar_prefetch = 0 : i64, scratch_operands = 0 : i64, tpu.core_type = #tpu.core_type<tc>, window_params = [{transform_indices = @transform_0, window_bounds = array<i64: 2, 16, 128>}, {transform_indices = @transform_1, window_bounds = array<i64: 8, 16, 128>}, {transform_indices = @transform_2, window_bounds = array<i64: 11, 128>}, {transform_indices = @transform_3, window_bounds = array<i64: 2, 8, 16, 128>}, {transform_indices = @transform_4, window_bounds = array<i64: 8, 128>}, {transform_indices = @transform_5, window_bounds = array<i64: 2, 128>}]} {
    %c0 = arith.constant 0 : index
    %c0_0 = arith.constant 0 : index
    %c0_1 = arith.constant 0 : index
    %0 = vector.load %arg1[%c0, %c0_0, %c0_1] : memref<2x16x128xf32, #tpu.memory_space<vmem>>, vector<2x16x128xf32>
    %c0_2 = arith.constant 0 : index
    %c0_3 = arith.constant 0 : index
    %c0_4 = arith.constant 0 : index
    %1 = vector.load %arg2[%c0_2, %c0_3, %c0_4] : memref<8x16x128xf32, #tpu.memory_space<vmem>>, vector<8x16x128xf32>
    %c0_5 = arith.constant 0 : index
    %c0_6 = arith.constant 0 : index
    %2 = vector.load %arg3[%c0_5, %c0_6] : memref<11x128xf32, #tpu.memory_space<vmem>>, vector<11x128xf32>
    %c0_7 = arith.constant 0 : index
    %c0_8 = arith.constant 0 : index
    %c0_9 = arith.constant 0 : index
    %c0_10 = arith.constant 0 : index
    %3 = vector.load %arg4[%c0_7, %c0_8, %c0_9, %c0_10] : memref<2x8x16x128xf32, #tpu.memory_space<vmem>>, vector<2x8x16x128xf32>
    %4 = vector.extract_strided_slice %0 {offsets = [0, 0, 0], sizes = [1, 16, 128], strides = [1, 1, 1]} : vector<2x16x128xf32> to vector<1x16x128xf32>
    %5 = vector.shape_cast %4 : vector<1x16x128xf32> to vector<16x128xf32>
    %6 = vector.extract_strided_slice %0 {offsets = [1, 0, 0], sizes = [1, 16, 128], strides = [1, 1, 1]} : vector<2x16x128xf32> to vector<1x16x128xf32>
    %7 = vector.shape_cast %6 : vector<1x16x128xf32> to vector<16x128xf32>
    %8 = vector.extract_strided_slice %1 {offsets = [0, 0, 0], sizes = [1, 16, 128], strides = [1, 1, 1]} : vector<8x16x128xf32> to vector<1x16x128xf32>
    %9 = vector.shape_cast %8 : vector<1x16x128xf32> to vector<16x128xf32>
    %10 = vector.extract_strided_slice %1 {offsets = [1, 0, 0], sizes = [1, 16, 128], strides = [1, 1, 1]} : vector<8x16x128xf32> to vector<1x16x128xf32>
    %11 = vector.shape_cast %10 : vector<1x16x128xf32> to vector<16x128xf32>
    %12 = vector.extract_strided_slice %1 {offsets = [2, 0, 0], sizes = [1, 16, 128], strides = [1, 1, 1]} : vector<8x16x128xf32> to vector<1x16x128xf32>
    %13 = vector.shape_cast %12 : vector<1x16x128xf32> to vector<16x128xf32>
    %14 = vector.extract_strided_slice %1 {offsets = [3, 0, 0], sizes = [1, 16, 128], strides = [1, 1, 1]} : vector<8x16x128xf32> to vector<1x16x128xf32>
    %15 = vector.shape_cast %14 : vector<1x16x128xf32> to vector<16x128xf32>
    %16 = vector.extract_strided_slice %1 {offsets = [4, 0, 0], sizes = [1, 16, 128], strides = [1, 1, 1]} : vector<8x16x128xf32> to vector<1x16x128xf32>
    %17 = vector.shape_cast %16 : vector<1x16x128xf32> to vector<16x128xf32>
    %18 = vector.extract_strided_slice %1 {offsets = [5, 0, 0], sizes = [1, 16, 128], strides = [1, 1, 1]} : vector<8x16x128xf32> to vector<1x16x128xf32>
    %19 = vector.shape_cast %18 : vector<1x16x128xf32> to vector<16x128xf32>
    %20 = vector.extract_strided_slice %1 {offsets = [6, 0, 0], sizes = [1, 16, 128], strides = [1, 1, 1]} : vector<8x16x128xf32> to vector<1x16x128xf32>
    %21 = vector.shape_cast %20 : vector<1x16x128xf32> to vector<16x128xf32>
    %22 = vector.extract_strided_slice %1 {offsets = [7, 0, 0], sizes = [1, 16, 128], strides = [1, 1, 1]} : vector<8x16x128xf32> to vector<1x16x128xf32>
    %23 = vector.shape_cast %22 : vector<1x16x128xf32> to vector<16x128xf32>
    %24 = vector.extract_strided_slice %2 {offsets = [0, 0], sizes = [1, 128], strides = [1, 1]} : vector<11x128xf32> to vector<1x128xf32>
    %25 = vector.extract_strided_slice %2 {offsets = [1, 0], sizes = [1, 128], strides = [1, 1]} : vector<11x128xf32> to vector<1x128xf32>
    %26 = vector.extract_strided_slice %2 {offsets = [2, 0], sizes = [1, 128], strides = [1, 1]} : vector<11x128xf32> to vector<1x128xf32>
    %27 = vector.extract_strided_slice %2 {offsets = [3, 0], sizes = [8, 128], strides = [1, 1]} : vector<11x128xf32> to vector<8x128xf32>
    %28 = vector.extract_strided_slice %3 {offsets = [0, 0, 0, 0], sizes = [1, 8, 16, 128], strides = [1, 1, 1, 1]} : vector<2x8x16x128xf32> to vector<1x8x16x128xf32>
    %29 = vector.shape_cast %28 : vector<1x8x16x128xf32> to vector<8x16x128xf32>
    %30 = vector.extract_strided_slice %3 {offsets = [1, 0, 0, 0], sizes = [1, 8, 16, 128], strides = [1, 1, 1, 1]} : vector<2x8x16x128xf32> to vector<1x8x16x128xf32>
    %31 = vector.shape_cast %30 : vector<1x8x16x128xf32> to vector<8x16x128xf32>
    %32 = arith.mulf %9, %9 : vector<16x128xf32>
    %33 = arith.mulf %11, %11 : vector<16x128xf32>
    %34 = arith.addf %32, %33 : vector<16x128xf32>
    %cst = arith.constant 1.000000e-30 : f32
    %35 = vector.broadcast %cst : f32 to vector<16x128xf32>
    %36 = arith.maximumf %34, %35 : vector<16x128xf32>
    %37 = math.rsqrt %36 : vector<16x128xf32>
    %38 = arith.mulf %9, %37 : vector<16x128xf32>
    %39 = arith.mulf %11, %37 : vector<16x128xf32>
    %40 = arith.mulf %38, %5 : vector<16x128xf32>
    %41 = arith.mulf %39, %7 : vector<16x128xf32>
    %42 = arith.subf %40, %41 : vector<16x128xf32>
    %43 = arith.mulf %38, %7 : vector<16x128xf32>
    %44 = arith.mulf %39, %5 : vector<16x128xf32>
    %45 = arith.addf %43, %44 : vector<16x128xf32>
    %46 = arith.mulf %13, %13 : vector<16x128xf32>
    %47 = arith.mulf %15, %15 : vector<16x128xf32>
    %48 = arith.addf %46, %47 : vector<16x128xf32>
    %cst_11 = arith.constant 1.000000e-30 : f32
    %49 = vector.broadcast %cst_11 : f32 to vector<16x128xf32>
    %50 = arith.maximumf %48, %49 : vector<16x128xf32>
    %51 = math.rsqrt %50 : vector<16x128xf32>
    %52 = arith.mulf %13, %51 : vector<16x128xf32>
    %53 = arith.mulf %15, %51 : vector<16x128xf32>
    %54 = arith.mulf %52, %5 : vector<16x128xf32>
    %55 = arith.mulf %53, %7 : vector<16x128xf32>
    %56 = arith.addf %54, %55 : vector<16x128xf32>
    %57 = arith.mulf %53, %5 : vector<16x128xf32>
    %58 = arith.mulf %52, %7 : vector<16x128xf32>
    %59 = arith.subf %57, %58 : vector<16x128xf32>
    %60 = arith.mulf %17, %56 : vector<16x128xf32>
    %61 = arith.mulf %19, %59 : vector<16x128xf32>
    %62 = arith.addf %60, %61 : vector<16x128xf32>
    %cst_12 = arith.constant dense<0.000000e+00> : vector<128xf32>
    %63 = vector.multi_reduction <add>, %62, %cst_12 [0] : vector<16x128xf32> to vector<128xf32>
    %64 = vector.shape_cast %63 : vector<128xf32> to vector<1x128xf32>
    %cst_13 = arith.constant 0.176776692 : f32
    %65 = vector.broadcast %cst_13 : f32 to vector<1x128xf32>
    %66 = arith.mulf %64, %65 : vector<1x128xf32>
    %67 = arith.mulf %17, %42 : vector<16x128xf32>
    %68 = arith.mulf %19, %45 : vector<16x128xf32>
    %69 = arith.addf %67, %68 : vector<16x128xf32>
    %cst_14 = arith.constant dense<0.000000e+00> : vector<128xf32>
    %70 = vector.multi_reduction <add>, %69, %cst_14 [0] : vector<16x128xf32> to vector<128xf32>
    %71 = vector.shape_cast %70 : vector<128xf32> to vector<1x128xf32>
    %cst_15 = arith.constant 0.176776692 : f32
    %72 = vector.broadcast %cst_15 : f32 to vector<1x128xf32>
    %73 = arith.mulf %71, %72 : vector<1x128xf32>
    %74 = arith.maximumf %66, %73 : vector<1x128xf32>
    %75 = arith.subf %66, %74 : vector<1x128xf32>
    %76 = math.exp %75 : vector<1x128xf32>
    %77 = arith.subf %73, %74 : vector<1x128xf32>
    %78 = math.exp %77 : vector<1x128xf32>
    %79 = arith.addf %76, %78 : vector<1x128xf32>
    %80 = tpu.reciprocal %79 {approx = true} : vector<1x128xf32> -> vector<1x128xf32>
    %81 = arith.mulf %76, %80 : vector<1x128xf32>
    %82 = arith.mulf %78, %80 : vector<1x128xf32>
    %83 = vector.broadcast %81 : vector<1x128xf32> to vector<16x128xf32>
    %84 = arith.mulf %83, %56 : vector<16x128xf32>
    %85 = vector.broadcast %82 : vector<1x128xf32> to vector<16x128xf32>
    %86 = arith.mulf %85, %42 : vector<16x128xf32>
    %87 = arith.addf %84, %86 : vector<16x128xf32>
    %88 = vector.broadcast %81 : vector<1x128xf32> to vector<16x128xf32>
    %89 = arith.mulf %88, %59 : vector<16x128xf32>
    %90 = vector.broadcast %82 : vector<1x128xf32> to vector<16x128xf32>
    %91 = arith.mulf %90, %45 : vector<16x128xf32>
    %92 = arith.addf %89, %91 : vector<16x128xf32>
    %cst_16 = arith.constant 0.000000e+00 : f32
    %93 = vector.broadcast %cst_16 : f32 to vector<1x128xf32>
    %94 = arith.maximumf %24, %93 : vector<1x128xf32>
    %95 = math.absf %24 : vector<1x128xf32>
    %cst_17 = arith.constant 0.000000e+00 : f32
    %96 = vector.broadcast %cst_17 : f32 to vector<1x128xf32>
    %97 = arith.subf %96, %95 : vector<1x128xf32>
    %98 = math.exp %97 : vector<1x128xf32>
    %99 = math.log1p %98 : vector<1x128xf32>
    %100 = arith.addf %94, %99 : vector<1x128xf32>
    %cst_18 = arith.constant 1.000000e-15 : f32
    %101 = vector.broadcast %cst_18 : f32 to vector<1x128xf32>
    %102 = arith.maximumf %100, %101 : vector<1x128xf32>
    %103 = math.rsqrt %102 : vector<1x128xf32>
    %104 = arith.mulf %100, %103 : vector<1x128xf32>
    %105 = arith.mulf %87, %87 : vector<16x128xf32>
    %106 = arith.mulf %92, %92 : vector<16x128xf32>
    %107 = arith.addf %105, %106 : vector<16x128xf32>
    %cst_19 = arith.constant dense<0.000000e+00> : vector<128xf32>
    %108 = vector.multi_reduction <add>, %107, %cst_19 [0] : vector<16x128xf32> to vector<128xf32>
    %109 = vector.shape_cast %108 : vector<128xf32> to vector<1x128xf32>
    %cst_20 = arith.constant 1.000000e-30 : f32
    %110 = vector.broadcast %cst_20 : f32 to vector<1x128xf32>
    %111 = arith.maximumf %109, %110 : vector<1x128xf32>
    %112 = math.rsqrt %111 : vector<1x128xf32>
    %113 = arith.mulf %111, %112 : vector<1x128xf32>
    %114 = arith.mulf %104, %113 : vector<1x128xf32>
    %115 = math.tanh %114 : vector<1x128xf32>
    %116 = arith.mulf %115, %112 : vector<1x128xf32>
    %117 = arith.mulf %116, %103 : vector<1x128xf32>
    %118 = arith.mulf %115, %103 : vector<1x128xf32>
    %119 = arith.mulf %118, %118 : vector<1x128xf32>
    %120 = vector.broadcast %117 : vector<1x128xf32> to vector<16x128xf32>
    %121 = arith.mulf %120, %87 : vector<16x128xf32>
    %122 = vector.broadcast %117 : vector<1x128xf32> to vector<16x128xf32>
    %123 = arith.mulf %122, %92 : vector<16x128xf32>
    %124 = arith.mulf %21, %21 : vector<16x128xf32>
    %125 = arith.mulf %23, %23 : vector<16x128xf32>
    %126 = arith.addf %124, %125 : vector<16x128xf32>
    %cst_21 = arith.constant dense<0.000000e+00> : vector<128xf32>
    %127 = vector.multi_reduction <add>, %126, %cst_21 [0] : vector<16x128xf32> to vector<128xf32>
    %128 = vector.shape_cast %127 : vector<128xf32> to vector<1x128xf32>
    %cst_22 = arith.constant 1.000000e-30 : f32
    %129 = vector.broadcast %cst_22 : f32 to vector<1x128xf32>
    %130 = arith.maximumf %128, %129 : vector<1x128xf32>
    %131 = math.rsqrt %130 : vector<1x128xf32>
    %132 = arith.mulf %130, %131 : vector<1x128xf32>
    %133 = arith.mulf %104, %132 : vector<1x128xf32>
    %134 = math.tanh %133 : vector<1x128xf32>
    %135 = arith.mulf %134, %131 : vector<1x128xf32>
    %136 = arith.mulf %135, %103 : vector<1x128xf32>
    %137 = arith.mulf %134, %103 : vector<1x128xf32>
    %138 = arith.mulf %137, %137 : vector<1x128xf32>
    %139 = vector.broadcast %136 : vector<1x128xf32> to vector<16x128xf32>
    %140 = arith.mulf %139, %21 : vector<16x128xf32>
    %141 = vector.broadcast %136 : vector<1x128xf32> to vector<16x128xf32>
    %142 = arith.mulf %141, %23 : vector<16x128xf32>
    %143 = arith.mulf %121, %140 : vector<16x128xf32>
    %144 = arith.mulf %123, %142 : vector<16x128xf32>
    %145 = arith.addf %143, %144 : vector<16x128xf32>
    %cst_23 = arith.constant dense<0.000000e+00> : vector<128xf32>
    %146 = vector.multi_reduction <add>, %145, %cst_23 [0] : vector<16x128xf32> to vector<128xf32>
    %147 = vector.shape_cast %146 : vector<128xf32> to vector<1x128xf32>
    %cst_24 = arith.constant 2.000000e+00 : f32
    %148 = vector.broadcast %cst_24 : f32 to vector<1x128xf32>
    %149 = arith.mulf %148, %100 : vector<1x128xf32>
    %150 = arith.mulf %149, %147 : vector<1x128xf32>
    %cst_25 = arith.constant 1.000000e+00 : f32
    %151 = vector.broadcast %cst_25 : f32 to vector<1x128xf32>
    %152 = arith.addf %151, %150 : vector<1x128xf32>
    %153 = arith.mulf %100, %138 : vector<1x128xf32>
    %154 = arith.addf %152, %153 : vector<1x128xf32>
    %155 = arith.mulf %100, %119 : vector<1x128xf32>
    %cst_26 = arith.constant 1.000000e+00 : f32
    %156 = vector.broadcast %cst_26 : f32 to vector<1x128xf32>
    %157 = arith.subf %156, %155 : vector<1x128xf32>
    %cst_27 = arith.constant 2.000000e+00 : f32
    %158 = vector.broadcast %cst_27 : f32 to vector<1x128xf32>
    %159 = arith.mulf %158, %100 : vector<1x128xf32>
    %160 = arith.mulf %159, %147 : vector<1x128xf32>
    %cst_28 = arith.constant 1.000000e+00 : f32
    %161 = vector.broadcast %cst_28 : f32 to vector<1x128xf32>
    %162 = arith.addf %161, %160 : vector<1x128xf32>
    %163 = arith.mulf %100, %100 : vector<1x128xf32>
    %164 = arith.mulf %163, %119 : vector<1x128xf32>
    %165 = arith.mulf %164, %138 : vector<1x128xf32>
    %166 = arith.addf %162, %165 : vector<1x128xf32>
    %cst_29 = arith.constant 1.000000e-15 : f32
    %167 = vector.broadcast %cst_29 : f32 to vector<1x128xf32>
    %168 = arith.maximumf %166, %167 : vector<1x128xf32>
    %cst_30 = arith.constant 1.000000e+00 : f32
    %169 = vector.broadcast %cst_30 : f32 to vector<1x128xf32>
    %170 = arith.divf %169, %168 : vector<1x128xf32>
    %171 = vector.broadcast %154 : vector<1x128xf32> to vector<16x128xf32>
    %172 = arith.mulf %171, %121 : vector<16x128xf32>
    %173 = vector.broadcast %157 : vector<1x128xf32> to vector<16x128xf32>
    %174 = arith.mulf %173, %140 : vector<16x128xf32>
    %175 = arith.addf %172, %174 : vector<16x128xf32>
    %176 = vector.broadcast %170 : vector<1x128xf32> to vector<16x128xf32>
    %177 = arith.mulf %175, %176 : vector<16x128xf32>
    %178 = vector.broadcast %154 : vector<1x128xf32> to vector<16x128xf32>
    %179 = arith.mulf %178, %123 : vector<16x128xf32>
    %180 = vector.broadcast %157 : vector<1x128xf32> to vector<16x128xf32>
    %181 = arith.mulf %180, %142 : vector<16x128xf32>
    %182 = arith.addf %179, %181 : vector<16x128xf32>
    %183 = vector.broadcast %170 : vector<1x128xf32> to vector<16x128xf32>
    %184 = arith.mulf %182, %183 : vector<16x128xf32>
    %185 = arith.mulf %177, %177 : vector<16x128xf32>
    %186 = arith.mulf %184, %184 : vector<16x128xf32>
    %187 = arith.addf %185, %186 : vector<16x128xf32>
    %cst_31 = arith.constant dense<0.000000e+00> : vector<128xf32>
    %188 = vector.multi_reduction <add>, %187, %cst_31 [0] : vector<16x128xf32> to vector<128xf32>
    %189 = vector.shape_cast %188 : vector<128xf32> to vector<1x128xf32>
    %cst_32 = arith.constant 1.000000e-30 : f32
    %190 = vector.broadcast %cst_32 : f32 to vector<1x128xf32>
    %191 = arith.maximumf %189, %190 : vector<1x128xf32>
    %192 = math.rsqrt %191 : vector<1x128xf32>
    %193 = arith.mulf %191, %192 : vector<1x128xf32>
    %cst_33 = arith.constant 0.995999991 : f32
    %194 = vector.broadcast %cst_33 : f32 to vector<1x128xf32>
    %195 = arith.mulf %194, %103 : vector<1x128xf32>
    %196 = arith.cmpf ogt, %193, %195 : vector<1x128xf32>
    %197 = arith.mulf %195, %192 : vector<1x128xf32>
    %cst_34 = arith.constant 1.000000e+00 : f32
    %198 = vector.broadcast %cst_34 : f32 to vector<1x128xf32>
    %199 = arith.select %196, %197, %198 : vector<1x128xi1>, vector<1x128xf32>
    %200 = vector.broadcast %199 : vector<1x128xf32> to vector<16x128xf32>
    %201 = arith.mulf %177, %200 : vector<16x128xf32>
    %202 = vector.broadcast %199 : vector<1x128xf32> to vector<16x128xf32>
    %203 = arith.mulf %184, %202 : vector<16x128xf32>
    %204 = arith.minimumf %193, %195 : vector<1x128xf32>
    %205 = arith.mulf %204, %204 : vector<1x128xf32>
    %206 = arith.mulf %29, %29 : vector<8x16x128xf32>
    %207 = arith.mulf %31, %31 : vector<8x16x128xf32>
    %208 = arith.addf %206, %207 : vector<8x16x128xf32>
    %cst_35 = arith.constant dense<0.000000e+00> : vector<8x128xf32>
    %209 = vector.multi_reduction <add>, %208, %cst_35 [1] : vector<8x16x128xf32> to vector<8x128xf32>
    %cst_36 = arith.constant 1.000000e-30 : f32
    %210 = vector.broadcast %cst_36 : f32 to vector<8x128xf32>
    %211 = arith.maximumf %209, %210 : vector<8x128xf32>
    %212 = math.rsqrt %211 : vector<8x128xf32>
    %213 = arith.mulf %211, %212 : vector<8x128xf32>
    %214 = vector.shape_cast %201 : vector<16x128xf32> to vector<1x16x128xf32>
    %215 = vector.broadcast %214 : vector<1x16x128xf32> to vector<8x16x128xf32>
    %216 = arith.mulf %215, %29 : vector<8x16x128xf32>
    %217 = vector.shape_cast %203 : vector<16x128xf32> to vector<1x16x128xf32>
    %218 = vector.broadcast %217 : vector<1x16x128xf32> to vector<8x16x128xf32>
    %219 = arith.mulf %218, %31 : vector<8x16x128xf32>
    %220 = arith.addf %216, %219 : vector<8x16x128xf32>
    %cst_37 = arith.constant dense<0.000000e+00> : vector<8x128xf32>
    %221 = vector.multi_reduction <add>, %220, %cst_37 [1] : vector<8x16x128xf32> to vector<8x128xf32>
    %222 = arith.mulf %221, %212 : vector<8x128xf32>
    %223 = vector.broadcast %104 : vector<1x128xf32> to vector<8x128xf32>
    %224 = arith.mulf %223, %213 : vector<8x128xf32>
    %225 = math.tanh %224 : vector<8x128xf32>
    %226 = vector.broadcast %103 : vector<1x128xf32> to vector<8x128xf32>
    %227 = arith.mulf %225, %226 : vector<8x128xf32>
    %cst_38 = arith.constant 2.000000e+00 : f32
    %228 = vector.broadcast %cst_38 : f32 to vector<1x128xf32>
    %229 = arith.mulf %228, %100 : vector<1x128xf32>
    %230 = vector.broadcast %229 : vector<1x128xf32> to vector<8x128xf32>
    %231 = arith.mulf %230, %227 : vector<8x128xf32>
    %232 = arith.mulf %231, %222 : vector<8x128xf32>
    %cst_39 = arith.constant 1.000000e+00 : f32
    %233 = vector.broadcast %cst_39 : f32 to vector<8x128xf32>
    %234 = arith.subf %233, %232 : vector<8x128xf32>
    %235 = vector.broadcast %100 : vector<1x128xf32> to vector<8x128xf32>
    %236 = arith.mulf %235, %227 : vector<8x128xf32>
    %237 = arith.mulf %236, %227 : vector<8x128xf32>
    %238 = arith.addf %234, %237 : vector<8x128xf32>
    %239 = arith.mulf %100, %205 : vector<1x128xf32>
    %cst_40 = arith.constant 1.000000e+00 : f32
    %240 = vector.broadcast %cst_40 : f32 to vector<1x128xf32>
    %241 = arith.subf %240, %239 : vector<1x128xf32>
    %242 = arith.mulf %238, %238 : vector<8x128xf32>
    %243 = vector.broadcast %205 : vector<1x128xf32> to vector<8x128xf32>
    %244 = arith.mulf %242, %243 : vector<8x128xf32>
    %245 = arith.mulf %241, %241 : vector<1x128xf32>
    %246 = vector.broadcast %245 : vector<1x128xf32> to vector<8x128xf32>
    %247 = arith.mulf %246, %227 : vector<8x128xf32>
    %248 = arith.mulf %247, %227 : vector<8x128xf32>
    %249 = arith.addf %244, %248 : vector<8x128xf32>
    %cst_41 = arith.constant 2.000000e+00 : f32
    %250 = vector.broadcast %cst_41 : f32 to vector<8x128xf32>
    %251 = arith.mulf %250, %238 : vector<8x128xf32>
    %252 = vector.broadcast %241 : vector<1x128xf32> to vector<8x128xf32>
    %253 = arith.mulf %251, %252 : vector<8x128xf32>
    %254 = arith.mulf %253, %227 : vector<8x128xf32>
    %255 = arith.mulf %254, %222 : vector<8x128xf32>
    %256 = arith.subf %249, %255 : vector<8x128xf32>
    %cst_42 = arith.constant 0.000000e+00 : f32
    %257 = vector.broadcast %cst_42 : f32 to vector<8x128xf32>
    %258 = arith.maximumf %256, %257 : vector<8x128xf32>
    %259 = math.sqrt %258 : vector<8x128xf32>
    %cst_43 = arith.constant 2.000000e+00 : f32
    %260 = vector.broadcast %cst_43 : f32 to vector<1x128xf32>
    %261 = arith.mulf %260, %100 : vector<1x128xf32>
    %262 = vector.broadcast %261 : vector<1x128xf32> to vector<8x128xf32>
    %263 = arith.mulf %262, %227 : vector<8x128xf32>
    %264 = arith.mulf %263, %222 : vector<8x128xf32>
    %cst_44 = arith.constant 1.000000e+00 : f32
    %265 = vector.broadcast %cst_44 : f32 to vector<8x128xf32>
    %266 = arith.subf %265, %264 : vector<8x128xf32>
    %267 = arith.mulf %100, %100 : vector<1x128xf32>
    %268 = vector.broadcast %267 : vector<1x128xf32> to vector<8x128xf32>
    %269 = arith.mulf %268, %227 : vector<8x128xf32>
    %270 = arith.mulf %269, %227 : vector<8x128xf32>
    %271 = vector.broadcast %205 : vector<1x128xf32> to vector<8x128xf32>
    %272 = arith.mulf %270, %271 : vector<8x128xf32>
    %273 = arith.addf %266, %272 : vector<8x128xf32>
    %cst_45 = arith.constant 1.000000e-15 : f32
    %274 = vector.broadcast %cst_45 : f32 to vector<8x128xf32>
    %275 = arith.maximumf %273, %274 : vector<8x128xf32>
    %276 = vector.broadcast %104 : vector<1x128xf32> to vector<8x128xf32>
    %277 = arith.mulf %276, %259 : vector<8x128xf32>
    %278 = arith.divf %277, %275 : vector<8x128xf32>
    %cst_46 = arith.constant -0.999989986 : f32
    %cst_47 = arith.constant 0.999989986 : f32
    %279 = vector.broadcast %cst_46 : f32 to vector<8x128xf32>
    %280 = arith.maximumf %279, %278 : vector<8x128xf32>
    %281 = vector.broadcast %cst_47 : f32 to vector<8x128xf32>
    %282 = arith.minimumf %281, %280 : vector<8x128xf32>
    %cst_48 = arith.constant 1.000000e+00 : f32
    %283 = vector.broadcast %cst_48 : f32 to vector<8x128xf32>
    %284 = arith.addf %283, %282 : vector<8x128xf32>
    %cst_49 = arith.constant 1.000000e+00 : f32
    %285 = vector.broadcast %cst_49 : f32 to vector<8x128xf32>
    %286 = arith.subf %285, %282 : vector<8x128xf32>
    %287 = arith.divf %284, %286 : vector<8x128xf32>
    %288 = math.log %287 : vector<8x128xf32>
    %cst_50 = arith.constant 5.000000e-01 : f32
    %289 = vector.broadcast %cst_50 : f32 to vector<8x128xf32>
    %290 = arith.mulf %289, %288 : vector<8x128xf32>
    %cst_51 = arith.constant 2.000000e+00 : f32
    %291 = vector.broadcast %cst_51 : f32 to vector<8x128xf32>
    %292 = arith.mulf %291, %290 : vector<8x128xf32>
    %293 = vector.broadcast %103 : vector<1x128xf32> to vector<8x128xf32>
    %294 = arith.mulf %292, %293 : vector<8x128xf32>
    %295 = vector.broadcast %25 : vector<1x128xf32> to vector<8x128xf32>
    %296 = arith.addf %295, %27 : vector<8x128xf32>
    %297 = arith.mulf %294, %294 : vector<8x128xf32>
    %298 = arith.subf %296, %297 : vector<8x128xf32>
    %299 = tpu.iota {dimensions = array<i32: 0>} : vector<8x128xi32>
    %c0_i32 = arith.constant 0 : i32
    %300 = vector.broadcast %c0_i32 : i32 to vector<8x128xi32>
    %301 = arith.cmpi eq, %299, %300 : vector<8x128xi32>
    %cst_52 = arith.constant 0.000000e+00 : f32
    %302 = vector.broadcast %cst_52 : f32 to vector<8x128xf32>
    %303 = arith.subf %302, %298 : vector<8x128xf32>
    %304 = arith.select %301, %298, %303 : vector<8x128xi1>, vector<8x128xf32>
    %cst_53 = arith.constant 0.000000e+00 : f32
    %305 = vector.broadcast %cst_53 : f32 to vector<8x128xf32>
    %306 = arith.minimumf %304, %305 : vector<8x128xf32>
    %307 = math.absf %304 : vector<8x128xf32>
    %cst_54 = arith.constant 0.000000e+00 : f32
    %308 = vector.broadcast %cst_54 : f32 to vector<8x128xf32>
    %309 = arith.subf %308, %307 : vector<8x128xf32>
    %310 = math.exp %309 : vector<8x128xf32>
    %311 = math.log1p %310 : vector<8x128xf32>
    %312 = arith.subf %306, %311 : vector<8x128xf32>
    %313 = vector.extract_strided_slice %312 {offsets = [0, 0], sizes = [1, 128], strides = [1, 1]} : vector<8x128xf32> to vector<1x128xf32>
    %cst_55 = arith.constant dense<0.000000e+00> : vector<128xf32>
    %314 = vector.multi_reduction <add>, %312, %cst_55 [0] : vector<8x128xf32> to vector<128xf32>
    %315 = vector.shape_cast %314 : vector<128xf32> to vector<1x128xf32>
    %316 = arith.subf %315, %313 : vector<1x128xf32>
    %cst_56 = arith.constant 0.142857149 : f32
    %317 = vector.broadcast %cst_56 : f32 to vector<1x128xf32>
    %318 = arith.mulf %316, %317 : vector<1x128xf32>
    %319 = arith.mulf %26, %313 : vector<1x128xf32>
    %320 = arith.mulf %26, %318 : vector<1x128xf32>
    %c0_57 = arith.constant 0 : index
    %c0_58 = arith.constant 0 : index
    %321 = vector.load %arg5[%c0_57, %c0_58] : memref<8x128xf32, #tpu.memory_space<vmem>>, vector<8x128xf32>
    tpu.vector_store %arg5[%c0_57, %c0_58], %298 {strides = array<i32>} : memref<8x128xf32, #tpu.memory_space<vmem>>, vector<8x128xf32>,
    %322 = tpu.concatenate %319, %320 in 0 : vector<1x128xf32>, vector<1x128xf32> -> vector<2x128xf32>
    %c0_59 = arith.constant 0 : index
    %c0_60 = arith.constant 0 : index
    %323 = vector.load %arg6[%c0_59, %c0_60] : memref<2x128xf32, #tpu.memory_space<vmem>>, vector<2x128xf32>
    tpu.vector_store %arg6[%c0_59, %c0_60], %322 {strides = array<i32>} : memref<2x128xf32, #tpu.memory_space<vmem>>, vector<2x128xf32>,
    return
  }
  func.func @transform_0(%arg0: i32) -> (i32, i32, i32) {
    %c0_i32 = arith.constant 0 : i32
    %c0_i32_0 = arith.constant 0 : i32
    %c0_i32_1 = arith.constant 0 : i32
    return %c0_i32, %c0_i32_0, %arg0 : i32, i32, i32
  }
  func.func @transform_1(%arg0: i32) -> (i32, i32, i32) {
    %c0_i32 = arith.constant 0 : i32
    %c0_i32_0 = arith.constant 0 : i32
    %c0_i32_1 = arith.constant 0 : i32
    return %c0_i32, %c0_i32_0, %arg0 : i32, i32, i32
  }
  func.func @transform_2(%arg0: i32) -> (i32, i32) {
    %c0_i32 = arith.constant 0 : i32
    %c0_i32_0 = arith.constant 0 : i32
    return %c0_i32, %arg0 : i32, i32
  }
  func.func @transform_3(%arg0: i32) -> (i32, i32, i32, i32) {
    %c0_i32 = arith.constant 0 : i32
    %c0_i32_0 = arith.constant 0 : i32
    %c0_i32_1 = arith.constant 0 : i32
    %c0_i32_2 = arith.constant 0 : i32
    return %c0_i32, %c0_i32_0, %c0_i32_1, %arg0 : i32, i32, i32, i32
  }
  func.func @transform_4(%arg0: i32) -> (i32, i32) {
    %c0_i32 = arith.constant 0 : i32
    %c0_i32_0 = arith.constant 0 : i32
    return %c0_i32, %arg0 : i32, i32
  }
  func.func @transform_5(%arg0: i32) -> (i32, i32) {
    %c0_i32 = arith.constant 0 : i32
    %c0_i32_0 = arith.constant 0 : i32
    return %c0_i32, %arg0 : i32, i32
  }
}

</mosaic_0001>

<llo_original>
// kernel: squeeze.5
$region0: #{squeeze.5}
  %s0 = inlined_call_operand.vmem [shape: f32[1024], index: 0, kind: input, shape index: {}]
  %s1 = inlined_call_operand.vmem [shape: f32[128,8], index: 1, kind: output, shape index: {}]
  %v2 = vld [vmem:[%s0] sm:$0xff]
  %vm3 = vcmask 64512
  %4 = vst.msk [vmem:[%s1] ss:$16 sm:$0x3] %vm3, %v2
  %5 = vst.msk [vmem:[%s1] ss:$16 sm:$0xc] %vm3, %v2
  %6 = vst.msk [vmem:[%s1] ss:$16 sm:$0x30] %vm3, %v2
  %7 = vst.msk [vmem:[%s1] ss:$16 sm:$0xc0] %vm3, %v2
  %v8 = vld [vmem:[%s0] sm:$0xff]
  %9 = vrot.lane.b32.xlu0 %v8, 120
  %v10 = vpop.permute.xlu0 %9
  %vm11 = vcmask 64512
  %s12 = scalar_lea.vmem %s1, 1
  %13 = vst.msk [vmem:[%s12] ss:$16 sm:$0x3] %vm11, %v10
  %s14 = scalar_lea.vmem %s1, 1
  %15 = vst.msk [vmem:[%s14] ss:$16 sm:$0xc] %vm11, %v10
  %s16 = scalar_lea.vmem %s1, 1
  %17 = vst.msk [vmem:[%s16] ss:$16 sm:$0x30] %vm11, %v10
  %s18 = scalar_lea.vmem %s1, 1
  %19 = vst.msk [vmem:[%s18] ss:$16 sm:$0xc0] %vm11, %v10
  %v20 = vld [vmem:[%s0] sm:$0xff]
  %21 = vrot.lane.b32.xlu0 %v20, 112
  %v22 = vpop.permute.xlu0 %21
  %vm23 = vcmask 64512
  %s24 = scalar_lea.vmem %s1, 2
  %25 = vst.msk [vmem:[%s24] ss:$16 sm:$0x3] %vm23, %v22
  %s26 = scalar_lea.vmem %s1, 2
  %27 = vst.msk [vmem:[%s26] ss:$16 sm:$0xc] %vm23, %v22
  %s28 = scalar_lea.vmem %s1, 2
  %29 = vst.msk [vmem:[%s28] ss:$16 sm:$0x30] %vm23, %v22
  %s30 = scalar_lea.vmem %s1, 2
  %31 = vst.msk [vmem:[%s30] ss:$16 sm:$0xc0] %vm23, %v22
  %v32 = vld [vmem:[%s0] sm:$0xff]
  %33 = vrot.lane.b32.xlu0 %v32, 104
  %v34 = vpop.permute.xlu0 %33
  %vm35 = vcmask 64512
  %s36 = scalar_lea.vmem %s1, 3
  %37 = vst.msk [vmem:[%s36] ss:$16 sm:$0x3] %vm35, %v34
  %s38 = scalar_lea.vmem %s1, 3
  %39 = vst.msk [vmem:[%s38] ss:$16 sm:$0xc] %vm35, %v34
  %s40 = scalar_lea.vmem %s1, 3
  %41 = vst.msk [vmem:[%s40] ss:$16 sm:$0x30] %vm35, %v34
  %s42 = scalar_lea.vmem %s1, 3
  %43 = vst.msk [vmem:[%s42] ss:$16 sm:$0xc0] %vm35, %v34
  %v44 = vld [vmem:[%s0] sm:$0xff]
  %45 = vrot.lane.b32.xlu0 %v44, 96
  %v46 = vpop.permute.xlu0 %45
  %vm47 = vcmask 64512
  %s48 = scalar_lea.vmem %s1, 4
  %49 = vst.msk [vmem:[%s48] ss:$16 sm:$0x3] %vm47, %v46
  %s50 = scalar_lea.vmem %s1, 4
  %51 = vst.msk [vmem:[%s50] ss:$16 sm:$0xc] %vm47, %v46
  %s52 = scalar_lea.vmem %s1, 4
  %53 = vst.msk [vmem:[%s52] ss:$16 sm:$0x30] %vm47, %v46
  %s54 = scalar_lea.vmem %s1, 4
  %55 = vst.msk [vmem:[%s54] ss:$16 sm:$0xc0] %vm47, %v46
  %v56 = vld [vmem:[%s0] sm:$0xff]
  %57 = vrot.lane.b32.xlu0 %v56, 88
  %v58 = vpop.permute.xlu0 %57
  %vm59 = vcmask 64512
  %s60 = scalar_lea.vmem %s1, 5
  %61 = vst.msk [vmem:[%s60] ss:$16 sm:$0x3] %vm59, %v58
  %s62 = scalar_lea.vmem %s1, 5
  %63 = vst.msk [vmem:[%s62] ss:$16 sm:$0xc] %vm59, %v58
  %s64 = scalar_lea.vmem %s1, 5
  %65 = vst.msk [vmem:[%s64] ss:$16 sm:$0x30] %vm59, %v58
  %s66 = scalar_lea.vmem %s1, 5
  %67 = vst.msk [vmem:[%s66] ss:$16 sm:$0xc0] %vm59, %v58
  %v68 = vld [vmem:[%s0] sm:$0xff]
  %69 = vrot.lane.b32.xlu0 %v68, 80
  %v70 = vpop.permute.xlu0 %69
  %vm71 = vcmask 64512
  %s72 = scalar_lea.vmem %s1, 6
  %73 = vst.msk [vmem:[%s72] ss:$16 sm:$0x3] %vm71, %v70
  %s74 = scalar_lea.vmem %s1, 6
  %75 = vst.msk [vmem:[%s74] ss:$16 sm:$0xc] %vm71, %v70
  %s76 = scalar_lea.vmem %s1, 6
  %77 = vst.msk [vmem:[%s76] ss:$16 sm:$0x30] %vm71, %v70
  %s78 = scalar_lea.vmem %s1, 6
  %79 = vst.msk [vmem:[%s78] ss:$16 sm:$0xc0] %vm71, %v70
  %v80 = vld [vmem:[%s0] sm:$0xff]
  %81 = vrot.lane.b32.xlu0 %v80, 72
  %v82 = vpop.permute.xlu0 %81
  %vm83 = vcmask 64512
  %s84 = scalar_lea.vmem %s1, 7
  %85 = vst.msk [vmem:[%s84] ss:$16 sm:$0x3] %vm83, %v82
  %s86 = scalar_lea.vmem %s1, 7
  %87 = vst.msk [vmem:[%s86] ss:$16 sm:$0xc] %vm83, %v82
  %s88 = scalar_lea.vmem %s1, 7
  %89 = vst.msk [vmem:[%s88] ss:$16 sm:$0x30] %vm83, %v82
  %s90 = scalar_lea.vmem %s1, 7
  %91 = vst.msk [vmem:[%s90] ss:$16 sm:$0xc0] %vm83, %v82
  %v92 = vld [vmem:[%s0] sm:$0xff]
  %93 = vrot.lane.b32.xlu0 %v92, 64
  %v94 = vpop.permute.xlu0 %93
  %vm95 = vcmask 64512
  %s96 = scalar_lea.vmem %s1, 8
  %97 = vst.msk [vmem:[%s96] ss:$16 sm:$0x3] %vm95, %v94
  %s98 = scalar_lea.vmem %s1, 8
  %99 = vst.msk [vmem:[%s98] ss:$16 sm:$0xc] %vm95, %v94
  %s100 = scalar_lea.vmem %s1, 8
  %101 = vst.msk [vmem:[%s100] ss:$16 sm:$0x30] %vm95, %v94
  %s102 = scalar_lea.vmem %s1, 8
  %103 = vst.msk [vmem:[%s102] ss:$16 sm:$0xc0] %vm95, %v94
  %v104 = vld [vmem:[%s0] sm:$0xff]
  %105 = vrot.lane.b32.xlu0 %v104, 56
  %v106 = vpop.permute.xlu0 %105
  %vm107 = vcmask 64512
  %s108 = scalar_lea.vmem %s1, 9
  %109 = vst.msk [vmem:[%s108] ss:$16 sm:$0x3] %vm107, %v106
  %s110 = scalar_lea.vmem %s1, 9
  %111 = vst.msk [vmem:[%s110] ss:$16 sm:$0xc] %vm107, %v106
  %s112 = scalar_lea.vmem %s1, 9
  %113 = vst.msk [vmem:[%s112] ss:$16 sm:$0x30] %vm107, %v106
  %s114 = scalar_lea.vmem %s1, 9
  %115 = vst.msk [vmem:[%s114] ss:$16 sm:$0xc0] %vm107, %v106
  %v116 = vld [vmem:[%s0] sm:$0xff]
  %117 = vrot.lane.b32.xlu0 %v116, 48
  %v118 = vpop.permute.xlu0 %117
  %vm119 = vcmask 64512
  %s120 = scalar_lea.vmem %s1, 10
  %121 = vst.msk [vmem:[%s120] ss:$16 sm:$0x3] %vm119, %v118
  %s122 = scalar_lea.vmem %s1, 10
  %123 = vst.msk [vmem:[%s122] ss:$16 sm:$0xc] %vm119, %v118
  %s124 = scalar_lea.vmem %s1, 10
  %125 = vst.msk [vmem:[%s124] ss:$16 sm:$0x30] %vm119, %v118
  %s126 = scalar_lea.vmem %s1, 10
  %127 = vst.msk [vmem:[%s126] ss:$16 sm:$0xc0] %vm119, %v118
  %v128 = vld [vmem:[%s0] sm:$0xff]
  %129 = vrot.lane.b32.xlu0 %v128, 40
  %v130 = vpop.permute.xlu0 %129
  %vm131 = vcmask 64512
  %s132 = scalar_lea.vmem %s1, 11
  %133 = vst.msk [vmem:[%s132] ss:$16 sm:$0x3] %vm131, %v130
  %s134 = scalar_lea.vmem %s1, 11
  %135 = vst.msk [vmem:[%s134] ss:$16 sm:$0xc] %vm131, %v130
  %s136 = scalar_lea.vmem %s1, 11
  %137 = vst.msk [vmem:[%s136] ss:$16 sm:$0x30] %vm131, %v130
  %s138 = scalar_lea.vmem %s1, 11
  %139 = vst.msk [vmem:[%s138] ss:$16 sm:$0xc0] %vm131, %v130
  %v140 = vld [vmem:[%s0] sm:$0xff]
  %141 = vrot.lane.b32.xlu0 %v140, 32
  %v142 = vpop.permute.xlu0 %141
  %vm143 = vcmask 64512
  %s144 = scalar_lea.vmem %s1, 12
  %145 = vst.msk [vmem:[%s144] ss:$16 sm:$0x3] %vm143, %v142
  %s146 = scalar_lea.vmem %s1, 12
  %147 = vst.msk [vmem:[%s146] ss:$16 sm:$0xc] %vm143, %v142
  %s148 = scalar_lea.vmem %s1, 12
  %149 = vst.msk [vmem:[%s148] ss:$16 sm:$0x30] %vm143, %v142
  %s150 = scalar_lea.vmem %s1, 12
  %151 = vst.msk [vmem:[%s150] ss:$16 sm:$0xc0] %vm143, %v142
  %v152 = vld [vmem:[%s0] sm:$0xff]
  %153 = vrot.lane.b32.xlu0 %v152, 24
  %v154 = vpop.permute.xlu0 %153
  %vm155 = vcmask 64512
  %s156 = scalar_lea.vmem %s1, 13
  %157 = vst.msk [vmem:[%s156] ss:$16 sm:$0x3] %vm155, %v154
  %s158 = scalar_lea.vmem %s1, 13
  %159 = vst.msk [vmem:[%s158] ss:$16 sm:$0xc] %vm155, %v154
  %s160 = scalar_lea.vmem %s1, 13
  %161 = vst.msk [vmem:[%s160] ss:$16 sm:$0x30] %vm155, %v154
  %s162 = scalar_lea.vmem %s1, 13
  %163 = vst.msk [vmem:[%s162] ss:$16 sm:$0xc0] %vm155, %v154
  %v164 = vld [vmem:[%s0] sm:$0xff]
  %165 = vrot.lane.b32.xlu0 %v164, 16
  %v166 = vpop.permute.xlu0 %165
  %vm167 = vcmask 64512
  %s168 = scalar_lea.vmem %s1, 14
  %169 = vst.msk [vmem:[%s168] ss:$16 sm:$0x3] %vm167, %v166
  %s170 = scalar_lea.vmem %s1, 14
  %171 = vst.msk [vmem:[%s170] ss:$16 sm:$0xc] %vm167, %v166
  %s172 = scalar_lea.vmem %s1, 14
  %173 = vst.msk [vmem:[%s172] ss:$16 sm:$0x30] %vm167, %v166
  %s174 = scalar_lea.vmem %s1, 14
  %175 = vst.msk [vmem:[%s174] ss:$16 sm:$0xc0] %vm167, %v166
  %v176 = vld [vmem:[%s0] sm:$0xff]
  %177 = vrot.lane.b32.xlu0 %v176, 8
  %v178 = vpop.permute.xlu0 %177
  %vm179 = vcmask 64512
  %s180 = scalar_lea.vmem %s1, 15
  %181 = vst.msk [vmem:[%s180] ss:$16 sm:$0x3] %vm179, %v178
  %s182 = scalar_lea.vmem %s1, 15
  %183 = vst.msk [vmem:[%s182] ss:$16 sm:$0xc] %vm179, %v178
  %s184 = scalar_lea.vmem %s1, 15
  %185 = vst.msk [vmem:[%s184] ss:$16 sm:$0x30] %vm179, %v178
  %s186 = scalar_lea.vmem %s1, 15
  %187 = vst.msk [vmem:[%s186] ss:$16 sm:$0xc0] %vm179, %v178

// kernel: kd_model_atth_reverse_forward.1
$region0: #{kd_model_atth_reverse_forward.1}
  #allocation0 [shape = 'u32[]', space=smem, size = 0x4, offset = 0x4, fixed_abs, tag = 'smem constant byte address 0x4 - core index']
  #allocation1 [shape = 'u32[144,128]{1,0:T(1,128)}', space=vmem, size = 0x12000, scoped, tag = 'internal scratch']
  %s0 = inlined_call_operand.vmem [shape: f32[2,16,128], index: 0, kind: input, shape index: {}]
  %s1 = inlined_call_operand.vmem [shape: f32[8,16,128], index: 1, kind: input, shape index: {}]
  %s2 = inlined_call_operand.vmem [shape: f32[11,128], index: 2, kind: input, shape index: {}]
  %s3 = inlined_call_operand.vmem [shape: f32[2,8,16,128], index: 3, kind: input, shape index: {}]
  %s4 = inlined_call_operand.vmem [shape: f32[8,128], index: 4, kind: output, shape index: {0}]
  %s5 = inlined_call_operand.vmem [shape: f32[2,128], index: 5, kind: output, shape index: {1}]
  %6 = xla_tuple %s4, %s5
  %s7 = sld [smem:[#allocation0]]
  $region34: #{kd_model_atth_reverse_forward.1} parent=0
    _
  %s9 = ssub.s32 1, %s7
  %s10 = scalar_select 0, %s9, %s7
  // Predicated region
  $region2: #{kd_model_atth_reverse_forward.1} parent=0 // pred_check
    _
  $region3: #{kd_model_atth_reverse_forward.1} parent=0 // pred_check_branch
    %12 = sbr.rel (0) target = $region5
  $region4: #{kd_model_atth_reverse_forward.1} parent=0 // pred_region
    _
  $region5: #{kd_model_atth_reverse_forward.1} parent=0 // pred_fallthru
    _
  // Predicated region
  $region6: #{kd_model_atth_reverse_forward.1} parent=0 // pred_check
    _
  $region7: #{kd_model_atth_reverse_forward.1} parent=0 // pred_check_branch
    %14 = sbr.rel (0) target = $region9
  $region8: #{kd_model_atth_reverse_forward.1} parent=0 // pred_region
    _
  $region9: #{kd_model_atth_reverse_forward.1} parent=0 // pred_fallthru
    _
  // Predicated region
  $region10: #{kd_model_atth_reverse_forward.1} parent=0 // pred_check
    _
  $region11: #{kd_model_atth_reverse_forward.1} parent=0 // pred_check_branch
    %16 = sbr.rel (0) target = $region13
  $region12: #{kd_model_atth_reverse_forward.1} parent=0 // pred_region
    _
  $region13: #{kd_model_atth_reverse_forward.1} parent=0 // pred_fallthru
    _
  // Predicated region
  $region14: #{kd_model_atth_reverse_forward.1} parent=0 // pred_check
    _
  $region15: #{kd_model_atth_reverse_forward.1} parent=0 // pred_check_branch
    %18 = sbr.rel (0) target = $region17
  $region16: #{kd_model_atth_reverse_forward.1} parent=0 // pred_region
    _
  $region17: #{kd_model_atth_reverse_forward.1} parent=0 // pred_fallthru
    _
  %v19 = vld [vmem:[%s0] sm:$0xff]
  %v20 = vld [vmem:[%s0 + $0x8] sm:$0xff]
  %v21 = vld [vmem:[%s0 + $0x10] sm:$0xff]
  %v22 = vld [vmem:[%s0 + $0x18] sm:$0xff]
  %v23 = vld [vmem:[%s1] sm:$0xff]
  %v24 = vld [vmem:[%s1 + $0x8] sm:$0xff]
  %v25 = vld [vmem:[%s1 + $0x10] sm:$0xff]
  %v26 = vld [vmem:[%s1 + $0x18] sm:$0xff]
  %v27 = vld [vmem:[%s1 + $0x20] sm:$0xff]
  %v28 = vld [vmem:[%s1 + $0x28] sm:$0xff]
  %v29 = vld [vmem:[%s1 + $0x30] sm:$0xff]
  %v30 = vld [vmem:[%s1 + $0x38] sm:$0xff]
  %v31 = vld [vmem:[%s1 + $0x40] sm:$0xff]
  %v32 = vld [vmem:[%s1 + $0x48] sm:$0xff]
  %v33 = vld [vmem:[%s1 + $0x50] sm:$0xff]
  %v34 = vld [vmem:[%s1 + $0x58] sm:$0xff]
  %v35 = vld [vmem:[%s1 + $0x60] sm:$0xff]
  %v36 = vld [vmem:[%s1 + $0x68] sm:$0xff]
  %v37 = vld [vmem:[%s1 + $0x70] sm:$0xff]
  %v38 = vld [vmem:[%s1 + $0x78] sm:$0xff]
  %v39 = vld [vmem:[%s2] sm:$0xff]
  %v40 = vld [vmem:[%s2 + $0x8] sm:$0x7]
  %v41 = vld [vmem:[%s3] sm:$0xff]
  %v42 = vld [vmem:[%s3 + $0x8] sm:$0xff]
  %v43 = vld [vmem:[%s3 + $0x10] sm:$0xff]
  %v44 = vld [vmem:[%s3 + $0x18] sm:$0xff]
  %v45 = vld [vmem:[%s3 + $0x20] sm:$0xff]
  %v46 = vld [vmem:[%s3 + $0x28] sm:$0xff]
  %v47 = vld [vmem:[%s3 + $0x30] sm:$0xff]
  %v48 = vld [vmem:[%s3 + $0x38] sm:$0xff]
  %v49 = vld [vmem:[%s3 + $0x40] sm:$0xff]
  %v50 = vld [vmem:[%s3 + $0x48] sm:$0xff]
  %v51 = vld [vmem:[%s3 + $0x50] sm:$0xff]
  %v52 = vld [vmem:[%s3 + $0x58] sm:$0xff]
  %v53 = vld [vmem:[%s3 + $0x60] sm:$0xff]
  %v54 = vld [vmem:[%s3 + $0x68] sm:$0xff]
  %v55 = vld [vmem:[%s3 + $0x70] sm:$0xff]
  %v56 = vld [vmem:[%s3 + $0x78] sm:$0xff]
  %v57 = vld [vmem:[%s3 + $0x80] sm:$0xff]
  %v58 = vld [vmem:[%s3 + $0x88] sm:$0xff]
  %v59 = vld [vmem:[%s3 + $0x90] sm:$0xff]
  %v60 = vld [vmem:[%s3 + $0x98] sm:$0xff]
  %v61 = vld [vmem:[%s3 + $0xa0] sm:$0xff]
  %v62 = vld [vmem:[%s3 + $0xa8] sm:$0xff]
  %v63 = vld [vmem:[%s3 + $0xb0] sm:$0xff]
  %v64 = vld [vmem:[%s3 + $0xb8] sm:$0xff]
  %v65 = vld [vmem:[%s3 + $0xc0] sm:$0xff]
  %v66 = vld [vmem:[%s3 + $0xc8] sm:$0xff]
  %v67 = vld [vmem:[%s3 + $0xd0] sm:$0xff]
  %v68 = vld [vmem:[%s3 + $0xd8] sm:$0xff]
  %v69 = vld [vmem:[%s3 + $0xe0] sm:$0xff]
  %v70 = vld [vmem:[%s3 + $0xe8] sm:$0xff]
  %v71 = vld [vmem:[%s3 + $0xf0] sm:$0xff]
  %v72 = vld [vmem:[%s3 + $0xf8] sm:$0xff]
  %v73 = vmul.f32 %v23, %v23
  %v74 = vmul.f32 %v24, %v24
  %v75 = vmul.f32 %v25, %v25
  %v76 = vmul.f32 %v26, %v26
  %v77 = vadd.f32 %v73, %v75
  %v78 = vadd.f32 %v74, %v76
  %v79 = vmax.f32 %v77, 1e-30
  %v80 = vmax.f32 %v78, 1e-30
  %v81 = vrsqrt.pop %v79
  %v82 = vrsqrt.pop %v80
  %v83 = vmul.f32 %v23, %v81
  %v84 = vmul.f32 %v24, %v82
  %v85 = vmul.f32 %v25, %v81
  %v86 = vmul.f32 %v26, %v82
  %v87 = vmul.f32 %v83, %v19
  %v88 = vmul.f32 %v84, %v20
  %v89 = vmul.f32 %v85, %v21
  %v90 = vmul.f32 %v86, %v22
  %v91 = vsub.f32 %v87, %v89
  %v92 = vsub.f32 %v88, %v90
  %v93 = vmul.f32 %v83, %v21
  %v94 = vmul.f32 %v84, %v22
  %v95 = vmul.f32 %v85, %v19
  %v96 = vmul.f32 %v86, %v20
  %v97 = vadd.f32 %v93, %v95
  %v98 = vadd.f32 %v94, %v96
  %v99 = vmul.f32 %v27, %v27
  %v100 = vmul.f32 %v28, %v28
  %v101 = vmul.f32 %v29, %v29
  %v102 = vmul.f32 %v30, %v30
  %v103 = vadd.f32 %v99, %v101
  %v104 = vadd.f32 %v100, %v102
  %v105 = vmax.f32 %v103, 1e-30
  %v106 = vmax.f32 %v104, 1e-30
  %v107 = vrsqrt.pop %v105
  %v108 = vrsqrt.pop %v106
  %v109 = vmul.f32 %v27, %v107
  %v110 = vmul.f32 %v28, %v108
  %v111 = vmul.f32 %v29, %v107
  %v112 = vmul.f32 %v30, %v108
  %v113 = vmul.f32 %v109, %v19
  %v114 = vmul.f32 %v110, %v20
  %v115 = vmul.f32 %v111, %v21
  %v116 = vmul.f32 %v112, %v22
  %v117 = vadd.f32 %v113, %v115
  %v118 = vadd.f32 %v114, %v116
  %v119 = vmul.f32 %v111, %v19
  %v120 = vmul.f32 %v112, %v20
  %v121 = vmul.f32 %v109, %v21
  %v122 = vmul.f32 %v110, %v22
  %v123 = vsub.f32 %v119, %v121
  %v124 = vsub.f32 %v120, %v122
  %v125 = vmul.f32 %v31, %v117
  %v126 = vmul.f32 %v32, %v118
  %v127 = vmul.f32 %v33, %v123
  %v128 = vmul.f32 %v34, %v124
  %v129 = vadd.f32 %v125, %v127
  %v130 = vadd.f32 %v126, %v128
  %v131 = vadd.f32 %v129, %v130
  %v132 = vrot.slane %v131, 4
  %v133 = vadd.f32 %v131, %v132
  %v134 = vrot.slane %v133, 2
  %v135 = vadd.f32 %v133, %v134
  %v136 = vrot.slane %v135, 1
  %v137 = vadd.f32 %v135, %v136
  %v138 = vmul.f32 %v137, 0.17677669
  %v139 = vmul.f32 %v31, %v91
  %v140 = vmul.f32 %v32, %v92
  %v141 = vmul.f32 %v33, %v97
  %v142 = vmul.f32 %v34, %v98
  %v143 = vadd.f32 %v139, %v141
  %v144 = vadd.f32 %v140, %v142
  %v145 = vadd.f32 %v143, %v144
  %v146 = vrot.slane %v145, 4
  %v147 = vadd.f32 %v145, %v146
  %v148 = vrot.slane %v147, 2
  %v149 = vadd.f32 %v147, %v148
  %v150 = vrot.slane %v149, 1
  %v151 = vadd.f32 %v149, %v150
  %v152 = vmul.f32 %v151, 0.17677669
  %v153 = vmax.f32 %v138, %v152
  %v154 = vsub.f32 %v138, %v153
  %v155 = vmul.f32 %v154, 1.442695
  %v156 = vpow.pop %v155
  %v157 = vsub.f32 %v152, %v153
  %v158 = vmul.f32 %v157, 1.442695
  %v159 = vpow.pop %v158
  %v160 = vadd.f32 %v156, %v159
  %v161 = vrcp.pop %v160
  %v162 = vmul.f32 %v156, %v161
  %v163 = vmul.f32 %v159, %v161
  %v164 = vmul.f32 %v162, %v117
  %v165 = vmul.f32 %v162, %v118
  %v166 = vmul.f32 %v163, %v91
  %v167 = vmul.f32 %v163, %v92
  %v168 = vadd.f32 %v164, %v166
  %v169 = vadd.f32 %v165, %v167
  %v170 = vmul.f32 %v162, %v123
  %v171 = vmul.f32 %v162, %v124
  %v172 = vmul.f32 %v163, %v97
  %v173 = vmul.f32 %v163, %v98
  %v174 = vadd.f32 %v170, %v172
  %v175 = vadd.f32 %v171, %v173
  %v176 = vmax.f32 %v39, 0.0
  %v177 = vand.u32 2147483647, %v39
  %v178 = vsub.f32 0.0, %v177
  %v179 = vmul.f32 %v178, 1.442695
  %v180 = vpow.pop %v179
  %v181 = vadd.f32 %v180, 1.0
  %v182 = vlog2.pop %v181
  %v183 = vmul.f32 %v182, 0.6931472
  %v184 = vmul.f32 -0.5, %v180
  %v185 = vadd.f32 %v184, 1.0
  %v186 = vmul.f32 %v185, %v180
  %v187 = vand.u32 2147483647, %v180
  %vm188 = vcmp.lt.f32.partialorder %v187, 0.0004427343
  %v189 = vsel %vm188, %v186, %v183
  %v190 = vadd.f32 %v176, %v189
  %v191 = vmax.f32 %v190, 1e-15
  %v192 = vrsqrt.pop %v191
  %v193 = vmul.f32 %v190, %v192
  %v194 = vmul.f32 %v168, %v168
  %v195 = vmul.f32 %v169, %v169
  %v196 = vmul.f32 %v174, %v174
  %v197 = vmul.f32 %v175, %v175
  %v198 = vadd.f32 %v194, %v196
  %v199 = vadd.f32 %v195, %v197
  %v200 = vadd.f32 %v198, %v199
  %v201 = vrot.slane %v200, 4
  %v202 = vadd.f32 %v200, %v201
  %v203 = vrot.slane %v202, 2
  %v204 = vadd.f32 %v202, %v203
  %v205 = vrot.slane %v204, 1
  %v206 = vadd.f32 %v204, %v205
  %v207 = vmax.f32 %v206, 1e-30
  %v208 = vrsqrt.pop %v207
  %v209 = vmul.f32 %v207, %v208
  %v210 = vmul.f32 %v193, %v209
  %v211 = vtanh.pop %v210
  %v212 = vmul.f32 %v211, %v208
  %v213 = vmul.f32 %v212, %v192
  %v214 = vmul.f32 %v211, %v192
  %v215 = vmul.f32 %v214, %v214
  %v216 = vlaneseq
  %v217 = vshrl.u32 %v216, 7
  %v218 = vsub.s32 0, %v217
  %v219 = vrot.slane %v213, %v218
  %v220 = vmul.f32 %v219, %v168
  %v221 = vmul.f32 %v219, %v169
  %v222 = vmul.f32 %v219, %v174
  %v223 = vmul.f32 %v219, %v175
  %v224 = vmul.f32 %v35, %v35
  %v225 = vmul.f32 %v36, %v36
  %v226 = vmul.f32 %v37, %v37
  %v227 = vmul.f32 %v38, %v38
  %v228 = vadd.f32 %v224, %v226
  %v229 = vadd.f32 %v225, %v227
  %v230 = vadd.f32 %v228, %v229
  %v231 = vrot.slane %v230, 4
  %v232 = vadd.f32 %v230, %v231
  %v233 = vrot.slane %v232, 2
  %v234 = vadd.f32 %v232, %v233
  %v235 = vrot.slane %v234, 1
  %v236 = vadd.f32 %v234, %v235
  %v237 = vmax.f32 %v236, 1e-30
  %v238 = vrsqrt.pop %v237
  %v239 = vmul.f32 %v237, %v238
  %v240 = vmul.f32 %v193, %v239
  %v241 = vtanh.pop %v240
  %v242 = vmul.f32 %v241, %v238
  %v243 = vmul.f32 %v242, %v192
  %v244 = vmul.f32 %v241, %v192
  %v245 = vmul.f32 %v244, %v244
  %v246 = vlaneseq
  %v247 = vshrl.u32 %v246, 7
  %v248 = vsub.s32 0, %v247
  %v249 = vrot.slane %v243, %v248
  %v250 = vmul.f32 %v249, %v35
  %v251 = vmul.f32 %v249, %v36
  %v252 = vmul.f32 %v249, %v37
  %v253 = vmul.f32 %v249, %v38
  %v254 = vmul.f32 %v220, %v250
  %v255 = vmul.f32 %v221, %v251
  %v256 = vmul.f32 %v222, %v252
  %v257 = vmul.f32 %v223, %v253
  %v258 = vadd.f32 %v254, %v256
  %v259 = vadd.f32 %v255, %v257
  %v260 = vadd.f32 %v258, %v259
  %v261 = vrot.slane %v260, 4
  %v262 = vadd.f32 %v260, %v261
  %v263 = vrot.slane %v262, 2
  %v264 = vadd.f32 %v262, %v263
  %v265 = vrot.slane %v264, 1
  %v266 = vadd.f32 %v264, %v265
  %v267 = vmul.f32 %v190, 2.0
  %v268 = vmul.f32 %v267, %v266
  %v269 = vadd.f32 %v268, 1.0
  %v270 = vmul.f32 %v190, %v245
  %v271 = vadd.f32 %v269, %v270
  %v272 = vmul.f32 %v190, %v215
  %v273 = vsub.f32 1.0, %v272
  %v274 = vmul.f32 %v190, %v190
  %v275 = vmul.f32 %v274, %v215
  %v276 = vmul.f32 %v275, %v245
  %v277 = vadd.f32 %v269, %v276
  %v278 = vmax.f32 %v277, 1e-15
  %v279 = vrcp.pop %v278
  %v280 = vmul.f32 1.0, %v279
  %v281 = vlaneseq
  %v282 = vshrl.u32 %v281, 7
  %v283 = vsub.s32 0, %v282
  %v284 = vrot.slane %v271, %v283
  %v285 = vmul.f32 %v284, %v220
  %v286 = vmul.f32 %v284, %v221
  %v287 = vlaneseq
  %v288 = vshrl.u32 %v287, 7
  %v289 = vsub.s32 0, %v288
  %v290 = vrot.slane %v273, %v289
  %v291 = vmul.f32 %v290, %v250
  %v292 = vmul.f32 %v290, %v251
  %v293 = vadd.f32 %v285, %v291
  %v294 = vadd.f32 %v286, %v292
  %v295 = vlaneseq
  %v296 = vshrl.u32 %v295, 7
  %v297 = vsub.s32 0, %v296
  %v298 = vrot.slane %v280, %v297
  %v299 = vmul.f32 %v293, %v298
  %v300 = vmul.f32 %v294, %v298
  %v301 = vmul.f32 %v284, %v222
  %v302 = vmul.f32 %v284, %v223
  %v303 = vmul.f32 %v290, %v252
  %v304 = vmul.f32 %v290, %v253
  %v305 = vadd.f32 %v301, %v303
  %v306 = vadd.f32 %v302, %v304
  %v307 = vmul.f32 %v305, %v298
  %v308 = vmul.f32 %v306, %v298
  %v309 = vmul.f32 %v299, %v299
  %v310 = vmul.f32 %v300, %v300
  %v311 = vmul.f32 %v307, %v307
  %v312 = vmul.f32 %v308, %v308
  %v313 = vadd.f32 %v309, %v311
  %v314 = vadd.f32 %v310, %v312
  %v315 = vadd.f32 %v313, %v314
  %v316 = vrot.slane %v315, 4
  %v317 = vadd.f32 %v315, %v316
  %v318 = vrot.slane %v317, 2
  %v319 = vadd.f32 %v317, %v318
  %v320 = vrot.slane %v319, 1
  %v321 = vadd.f32 %v319, %v320
  %v322 = vmax.f32 %v321, 1e-30
  %v323 = vrsqrt.pop %v322
  %v324 = vmul.f32 %v322, %v323
  %v325 = vmul.f32 %v192, 0.996
  %vm326 = vcmp.gt.f32.partialorder %v324, %v325
  %v327 = vmul.f32 %v325, %v323
  %v328 = vsel %vm326, %v327, 1.0
  %v329 = vlaneseq
  %v330 = vshrl.u32 %v329, 7
  %v331 = vsub.s32 0, %v330
  %v332 = vrot.slane %v328, %v331
  %v333 = vmul.f32 %v299, %v332
  %v334 = vmul.f32 %v300, %v332
  %v335 = vmul.f32 %v307, %v332
  %v336 = vmul.f32 %v308, %v332
  %v337 = vmin.f32 %v324, %v325
  %v338 = vmul.f32 %v337, %v337
  %v339 = vmul.f32 %v41, %v41
  %v340 = vmul.f32 %v42, %v42
  %v341 = vmul.f32 %v43, %v43
  %v342 = vmul.f32 %v44, %v44
  %v343 = vmul.f32 %v45, %v45
  %v344 = vmul.f32 %v46, %v46
  %v345 = vmul.f32 %v47, %v47
  %v346 = vmul.f32 %v48, %v48
  %v347 = vmul.f32 %v49, %v49
  %v348 = vmul.f32 %v50, %v50
  %v349 = vmul.f32 %v51, %v51
  %v350 = vmul.f32 %v52, %v52
  %v351 = vmul.f32 %v53, %v53
  %v352 = vmul.f32 %v54, %v54
  %v353 = vmul.f32 %v55, %v55
  %v354 = vmul.f32 %v56, %v56
  %v355 = vmul.f32 %v57, %v57
  %v356 = vmul.f32 %v58, %v58
  %v357 = vmul.f32 %v59, %v59
  %v358 = vmul.f32 %v60, %v60
  %v359 = vmul.f32 %v61, %v61
  %v360 = vmul.f32 %v62, %v62
  %v361 = vmul.f32 %v63, %v63
  %v362 = vmul.f32 %v64, %v64
  %v363 = vmul.f32 %v65, %v65
  %v364 = vmul.f32 %v66, %v66
  %v365 = vmul.f32 %v67, %v67
  %v366 = vmul.f32 %v68, %v68
  %v367 = vmul.f32 %v69, %v69
  %v368 = vmul.f32 %v70, %v70
  %v369 = vmul.f32 %v71, %v71
  %v370 = vmul.f32 %v72, %v72
  %v371 = vadd.f32 %v339, %v355
  %v372 = vadd.f32 %v340, %v356
  %v373 = vadd.f32 %v341, %v357
  %v374 = vadd.f32 %v342, %v358
  %v375 = vadd.f32 %v343, %v359
  %v376 = vadd.f32 %v344, %v360
  %v377 = vadd.f32 %v345, %v361
  %v378 = vadd.f32 %v346, %v362
  %v379 = vadd.f32 %v347, %v363
  %v380 = vadd.f32 %v348, %v364
  %v381 = vadd.f32 %v349, %v365
  %v382 = vadd.f32 %v350, %v366
  %v383 = vadd.f32 %v351, %v367
  %v384 = vadd.f32 %v352, %v368
  %v385 = vadd.f32 %v353, %v369
  %v386 = vadd.f32 %v354, %v370
  %v387 = vadd.f32 %v371, %v372
  %v388 = vrot.slane %v387, 4
  %v389 = vadd.f32 %v387, %v388
  %v390 = vrot.slane %v389, 2
  %v391 = vadd.f32 %v389, %v390
  %v392 = vrot.slane %v391, 1
  %v393 = vadd.f32 %v391, %v392
  %v394 = vadd.f32 %v373, %v374
  %v395 = vrot.slane %v394, 4
  %v396 = vadd.f32 %v394, %v395
  %v397 = vrot.slane %v396, 2
  %v398 = vadd.f32 %v396, %v397
  %v399 = vrot.slane %v398, 1
  %v400 = vadd.f32 %v398, %v399
  %v401 = vadd.f32 %v375, %v376
  %v402 = vrot.slane %v401, 4
  %v403 = vadd.f32 %v401, %v402
  %v404 = vrot.slane %v403, 2
  %v405 = vadd.f32 %v403, %v404
  %v406 = vrot.slane %v405, 1
  %v407 = vadd.f32 %v405, %v406
  %v408 = vadd.f32 %v377, %v378
  %v409 = vrot.slane %v408, 4
  %v410 = vadd.f32 %v408, %v409
  %v411 = vrot.slane %v410, 2
  %v412 = vadd.f32 %v410, %v411
  %v413 = vrot.slane %v412, 1
  %v414 = vadd.f32 %v412, %v413
  %v415 = vadd.f32 %v379, %v380
  %v416 = vrot.slane %v415, 4
  %v417 = vadd.f32 %v415, %v416
  %v418 = vrot.slane %v417, 2
  %v419 = vadd.f32 %v417, %v418
  %v420 = vrot.slane %v419, 1
  %v421 = vadd.f32 %v419, %v420
  %v422 = vadd.f32 %v381, %v382
  %v423 = vrot.slane %v422, 4
  %v424 = vadd.f32 %v422, %v423
  %v425 = vrot.slane %v424, 2
  %v426 = vadd.f32 %v424, %v425
  %v427 = vrot.slane %v426, 1
  %v428 = vadd.f32 %v426, %v427
  %v429 = vadd.f32 %v383, %v384
  %v430 = vrot.slane %v429, 4
  %v431 = vadd.f32 %v429, %v430
  %v432 = vrot.slane %v431, 2
  %v433 = vadd.f32 %v431, %v432
  %v434 = vrot.slane %v433, 1
  %v435 = vadd.f32 %v433, %v434
  %v436 = vadd.f32 %v385, %v386
  %v437 = vrot.slane %v436, 4
  %v438 = vadd.f32 %v436, %v437
  %v439 = vrot.slane %v438, 2
  %v440 = vadd.f32 %v438, %v439
  %v441 = vrot.slane %v440, 1
  %v442 = vadd.f32 %v440, %v441
  %v443 = vmax.f32 %v393, 1e-30
  %v444 = vmax.f32 %v400, 1e-30
  %v445 = vmax.f32 %v407, 1e-30
  %v446 = vmax.f32 %v414, 1e-30
  %v447 = vmax.f32 %v421, 1e-30
  %v448 = vmax.f32 %v428, 1e-30
  %v449 = vmax.f32 %v435, 1e-30
  %v450 = vmax.f32 %v442, 1e-30
  %v451 = vrsqrt.pop %v443
  %v452 = vrsqrt.pop %v444
  %v453 = vrsqrt.pop %v445
  %v454 = vrsqrt.pop %v446
  %v455 = vrsqrt.pop %v447
  %v456 = vrsqrt.pop %v448
  %v457 = vrsqrt.pop %v449
  %v458 = vrsqrt.pop %v450
  %v459 = vmul.f32 %v443, %v451
  %v460 = vmul.f32 %v444, %v452
  %v461 = vmul.f32 %v445, %v453
  %v462 = vmul.f32 %v446, %v454
  %v463 = vmul.f32 %v447, %v455
  %v464 = vmul.f32 %v448, %v456
  %v465 = vmul.f32 %v449, %v457
  %v466 = vmul.f32 %v450, %v458
  %v467 = vmul.f32 %v333, %v41
  %v468 = vmul.f32 %v334, %v42
  %v469 = vmul.f32 %v333, %v43
  %v470 = vmul.f32 %v334, %v44
  %v471 = vmul.f32 %v333, %v45
  %v472 = vmul.f32 %v334, %v46
  %v473 = vmul.f32 %v333, %v47
  %v474 = vmul.f32 %v334, %v48
  %v475 = vmul.f32 %v333, %v49
  %v476 = vmul.f32 %v334, %v50
  %v477 = vmul.f32 %v333, %v51
  %v478 = vmul.f32 %v334, %v52
  %v479 = vmul.f32 %v333, %v53
  %v480 = vmul.f32 %v334, %v54
  %v481 = vmul.f32 %v333, %v55
  %v482 = vmul.f32 %v334, %v56
  %v483 = vmul.f32 %v335, %v57
  %v484 = vmul.f32 %v336, %v58
  %v485 = vmul.f32 %v335, %v59
  %v486 = vmul.f32 %v336, %v60
  %v487 = vmul.f32 %v335, %v61
  %v488 = vmul.f32 %v336, %v62
  %v489 = vmul.f32 %v335, %v63
  %v490 = vmul.f32 %v336, %v64
  %v491 = vmul.f32 %v335, %v65
  %v492 = vmul.f32 %v336, %v66
  %v493 = vmul.f32 %v335, %v67
  %v494 = vmul.f32 %v336, %v68
  %v495 = vmul.f32 %v335, %v69
  %v496 = vmul.f32 %v336, %v70
  %v497 = vmul.f32 %v335, %v71
  %v498 = vmul.f32 %v336, %v72
  %v499 = vadd.f32 %v467, %v483
  %v500 = vadd.f32 %v468, %v484
  %v501 = vadd.f32 %v469, %v485
  %v502 = vadd.f32 %v470, %v486
  %v503 = vadd.f32 %v471, %v487
  %v504 = vadd.f32 %v472, %v488
  %v505 = vadd.f32 %v473, %v489
  %v506 = vadd.f32 %v474, %v490
  %v507 = vadd.f32 %v475, %v491
  %v508 = vadd.f32 %v476, %v492
  %v509 = vadd.f32 %v477, %v493
  %v510 = vadd.f32 %v478, %v494
  %v511 = vadd.f32 %v479, %v495
  %v512 = vadd.f32 %v480, %v496
  %v513 = vadd.f32 %v481, %v497
  %v514 = vadd.f32 %v482, %v498
  %v515 = vadd.f32 %v499, %v500
  %v516 = vrot.slane %v515, 4
  %v517 = vadd.f32 %v515, %v516
  %v518 = vrot.slane %v517, 2
  %v519 = vadd.f32 %v517, %v518
  %v520 = vrot.slane %v519, 1
  %v521 = vadd.f32 %v519, %v520
  %v522 = vadd.f32 %v501, %v502
  %v523 = vrot.slane %v522, 4
  %v524 = vadd.f32 %v522, %v523
  %v525 = vrot.slane %v524, 2
  %v526 = vadd.f32 %v524, %v525
  %v527 = vrot.slane %v526, 1
  %v528 = vadd.f32 %v526, %v527
  %v529 = vadd.f32 %v503, %v504
  %v530 = vrot.slane %v529, 4
  %v531 = vadd.f32 %v529, %v530
  %v532 = vrot.slane %v531, 2
  %v533 = vadd.f32 %v531, %v532
  %v534 = vrot.slane %v533, 1
  %v535 = vadd.f32 %v533, %v534
  %v536 = vadd.f32 %v505, %v506
  %v537 = vrot.slane %v536, 4
  %v538 = vadd.f32 %v536, %v537
  %v539 = vrot.slane %v538, 2
  %v540 = vadd.f32 %v538, %v539
  %v541 = vrot.slane %v540, 1
  %v542 = vadd.f32 %v540, %v541
  %v543 = vadd.f32 %v507, %v508
  %v544 = vrot.slane %v543, 4
  %v545 = vadd.f32 %v543, %v544
  %v546 = vrot.slane %v545, 2
  %v547 = vadd.f32 %v545, %v546
  %v548 = vrot.slane %v547, 1
  %v549 = vadd.f32 %v547, %v548
  %v550 = vadd.f32 %v509, %v510
  %v551 = vrot.slane %v550, 4
  %v552 = vadd.f32 %v550, %v551
  %v553 = vrot.slane %v552, 2
  %v554 = vadd.f32 %v552, %v553
  %v555 = vrot.slane %v554, 1
  %v556 = vadd.f32 %v554, %v555
  %v557 = vadd.f32 %v511, %v512
  %v558 = vrot.slane %v557, 4
  %v559 = vadd.f32 %v557, %v558
  %v560 = vrot.slane %v559, 2
  %v561 = vadd.f32 %v559, %v560
  %v562 = vrot.slane %v561, 1
  %v563 = vadd.f32 %v561, %v562
  %v564 = vadd.f32 %v513, %v514
  %v565 = vrot.slane %v564, 4
  %v566 = vadd.f32 %v564, %v565
  %v567 = vrot.slane %v566, 2
  %v568 = vadd.f32 %v566, %v567
  %v569 = vrot.slane %v568, 1
  %v570 = vadd.f32 %v568, %v569
  %v571 = vmul.f32 %v521, %v451
  %v572 = vmul.f32 %v528, %v452
  %v573 = vmul.f32 %v535, %v453
  %v574 = vmul.f32 %v542, %v454
  %v575 = vmul.f32 %v549, %v455
  %v576 = vmul.f32 %v556, %v456
  %v577 = vmul.f32 %v563, %v457
  %v578 = vmul.f32 %v570, %v458
  %v579 = vlaneseq
  %v580 = vshrl.u32 %v579, 7
  %v581 = vsub.s32 0, %v580
  %v582 = vrot.slane %v193, %v581
  %vm591 = vcmask 1041409
  %v592 = vsel %vm591, %v460, %v459
  %vm593 = vcmask 1042434
  %v594 = vsel %vm593, %v461, %v592
  %vm595 = vcmask 1043459
  %v596 = vsel %vm595, %v462, %v594
  %vm597 = vcmask 1044484
  %v598 = vsel %vm597, %v463, %v596
  %vm599 = vcmask 1045509
  %v600 = vsel %vm599, %v464, %v598
  %vm601 = vcmask 1046534
  %v602 = vsel %vm601, %v465, %v600
  %vm603 = vcmask 1047559
  %v604 = vsel %vm603, %v466, %v602
  %v606 = vmul.f32 %v582, %v604
  %v607 = vtanh.pop %v606
  %v608 = vlaneseq
  %v609 = vshrl.u32 %v608, 7
  %v610 = vsub.s32 0, %v609
  %v611 = vrot.slane %v192, %v610
  %v612 = vmul.f32 %v607, %v611
  %v613 = vlaneseq
  %v614 = vshrl.u32 %v613, 7
  %v615 = vsub.s32 0, %v614
  %v616 = vrot.slane %v267, %v615
  %v617 = vmul.f32 %v616, %v612
  %v626 = vsel %vm591, %v572, %v571
  %v627 = vsel %vm593, %v573, %v626
  %v628 = vsel %vm595, %v574, %v627
  %v629 = vsel %vm597, %v575, %v628
  %v630 = vsel %vm599, %v576, %v629
  %v631 = vsel %vm601, %v577, %v630
  %v632 = vsel %vm603, %v578, %v631
  %v634 = vmul.f32 %v617, %v632
  %v635 = vsub.f32 1.0, %v634
  %v636 = vlaneseq
  %v637 = vshrl.u32 %v636, 7
  %v638 = vsub.s32 0, %v637
  %v639 = vrot.slane %v190, %v638
  %v640 = vmul.f32 %v639, %v612
  %v641 = vmul.f32 %v640, %v612
  %v642 = vadd.f32 %v635, %v641
  %v643 = vmul.f32 %v190, %v338
  %v644 = vsub.f32 1.0, %v643
  %v645 = vmul.f32 %v642, %v642
  %v646 = vlaneseq
  %v647 = vshrl.u32 %v646, 7
  %v648 = vsub.s32 0, %v647
  %v649 = vrot.slane %v338, %v648
  %v650 = vmul.f32 %v645, %v649
  %v651 = vmul.f32 %v644, %v644
  %v652 = vlaneseq
  %v653 = vshrl.u32 %v652, 7
  %v654 = vsub.s32 0, %v653
  %v655 = vrot.slane %v651, %v654
  %v656 = vmul.f32 %v655, %v612
  %v657 = vmul.f32 %v656, %v612
  %v658 = vadd.f32 %v650, %v657
  %v659 = vmul.f32 %v642, 2.0
  %v660 = vlaneseq
  %v661 = vshrl.u32 %v660, 7
  %v662 = vsub.s32 0, %v661
  %v663 = vrot.slane %v644, %v662
  %v664 = vmul.f32 %v659, %v663
  %v665 = vmul.f32 %v664, %v612
  %v666 = vmul.f32 %v665, %v632
  %v667 = vsub.f32 %v658, %v666
  %v668 = vmax.f32 %v667, 0.0
  %v669 = vrsqrt.pop %v668
  %v670 = vmul.f32 %v668, %v669
  %vm671 = vcmp.eq.f32.partialorder %v668, inf
  %v672 = vsel %vm671, %v668, %v670
  %vm673 = vcmp.eq.f32.partialorder %v668, 0.0
  %v674 = vand.u32 %v668, 2147483648
  %v675 = vsel %vm673, %v674, %v672
  %v676 = vlaneseq
  %v677 = vshrl.u32 %v676, 7
  %v678 = vsub.s32 0, %v677
  %v679 = vrot.slane %v274, %v678
  %v680 = vmul.f32 %v679, %v612
  %v681 = vmul.f32 %v680, %v612
  %v682 = vmul.f32 %v681, %v649
  %v683 = vadd.f32 %v635, %v682
  %v684 = vmax.f32 %v683, 1e-15
  %v685 = vmul.f32 %v582, %v675
  %v686 = vrcp.pop %v684
  %v687 = vmul.f32 %v685, %v686
  %v688 = vmax.f32 %v687, -0.99999
  %v689 = vmin.f32 %v688, 0.99999
  %v690 = vadd.f32 %v689, 1.0
  %v691 = vsub.f32 1.0, %v689
  %v692 = vrcp.pop %v691
  %v693 = vmul.f32 %v690, %v692
  %v694 = vlog2.pop %v693
  %v695 = vmul.f32 %v694, 0.6931472
  %v696 = vmul.f32 %v695, 0.5
  %v697 = vmul.f32 %v696, 2.0
  %v698 = vmul.f32 %v697, %v611
  %v699 = vlaneseq
  %v700 = vshrl.u32 %v699, 7
  %v701 = vsub.s32 1, %v700
  %v702 = vrot.slane %v39, %v701
  %v703 = vadd.f32 %v702, %v39
  %v704 = vadd.f32 %v702, %v40
  %v705 = vmul.f32 %v698, %v698
  %v707 = vrot.slane %v705, 5
  %v709 = vsub.f32 %v703, %v707
  %v710 = vsub.f32 %v704, %v707
  %v711 = vlaneseq
  %v712 = vshrl.u32 %v711, 7
  %vm713 = vcmp.eq.s32.totalorder %v712, 0
  %v714 = vsub.f32 0.0, %v709
  %v715 = vsub.f32 0.0, %v710
  %vm718 = vcmask 1044480
  %v719 = vrot.slane %v709, 3
  %v720 = vrot.slane %v710, 3
  %v721 = vsel %vm718, %v719, %v720
  %v725 = vrot.slane %v714, 3
  %v726 = vrot.slane %v715, 3
  %v727 = vsel %vm718, %v725, %v726
  %v729 = vsel %vm713, %v721, %v727
  %v730 = vmin.f32 %v729, 0.0
  %v731 = vand.u32 2147483647, %v729
  %v732 = vsub.f32 0.0, %v731
  %v733 = vmul.f32 %v732, 1.442695
  %v734 = vpow.pop %v733
  %v735 = vadd.f32 %v734, 1.0
  %v736 = vlog2.pop %v735
  %v737 = vmul.f32 %v736, 0.6931472
  %v738 = vmul.f32 -0.5, %v734
  %v739 = vadd.f32 %v738, 1.0
  %v740 = vmul.f32 %v739, %v734
  %v741 = vand.u32 2147483647, %v734
  %vm742 = vcmp.lt.f32.partialorder %v741, 0.0004427343
  %v743 = vsel %vm742, %v740, %v737
  %v744 = vsub.f32 %v730, %v743
  %v745 = vrot.slane %v744, 4
  %v746 = vadd.f32 %v744, %v745
  %v747 = vrot.slane %v746, 2
  %v748 = vadd.f32 %v746, %v747
  %v749 = vrot.slane %v748, 1
  %v750 = vadd.f32 %v748, %v749
  %v751 = vsub.f32 %v750, %v744
  %v752 = vmul.f32 %v751, 0.14285715
  %v754 = vrot.slane %v744, 6
  %v756 = vmul.f32 %v39, %v754
  %v758 = vrot.slane %v752, 6
  %v760 = vmul.f32 %v39, %v758
  %761 = vst [vmem:[%s4 - $0x3] sm:$0xf8] %v709
  %762 = vst [vmem:[%s4 + $0x5] sm:$0x7] %v710
  %v764 = vrot.slane %v756, 2
  %v767 = vrot.slane %v760, 1
  %vm769 = vcmask 1040384
  %v770 = vsel %vm769, %v764, %v767
  %771 = vst [vmem:[%s5] sm:$0x3] %v770
  // Predicated region
  $region18: #{kd_model_atth_reverse_forward.1} parent=0 // pred_check
    _
  $region19: #{kd_model_atth_reverse_forward.1} parent=0 // pred_check_branch
    %773 = sbr.rel (0) target = $region21
  $region20: #{kd_model_atth_reverse_forward.1} parent=0 // pred_region
    _
  $region21: #{kd_model_atth_reverse_forward.1} parent=0 // pred_fallthru
    _
  // Predicated region
  $region22: #{kd_model_atth_reverse_forward.1} parent=0 // pred_check
    _
  $region23: #{kd_model_atth_reverse_forward.1} parent=0 // pred_check_branch
    %775 = sbr.rel (0) target = $region25
  $region24: #{kd_model_atth_reverse_forward.1} parent=0 // pred_region
    _
  $region25: #{kd_model_atth_reverse_forward.1} parent=0 // pred_fallthru
    _
  // Predicated region
  $region26: #{kd_model_atth_reverse_forward.1} parent=0 // pred_check
    _
  $region27: #{kd_model_atth_reverse_forward.1} parent=0 // pred_check_branch
    %777 = sbr.rel (0) target = $region29
  $region28: #{kd_model_atth_reverse_forward.1} parent=0 // pred_region
    _
  $region29: #{kd_model_atth_reverse_forward.1} parent=0 // pred_fallthru
    _
  // Predicated region
  $region30: #{kd_model_atth_reverse_forward.1} parent=0 // pred_check
    _
  $region31: #{kd_model_atth_reverse_forward.1} parent=0 // pred_check_branch
    %779 = sbr.rel (0) target = $region33
  $region32: #{kd_model_atth_reverse_forward.1} parent=0 // pred_region
    _
  $region33: #{kd_model_atth_reverse_forward.1} parent=0 // pred_fallthru
    _

</llo_original>
